<compile_context>
chip_gen: v6e
topology: v6e:2x2x1
jax: 0.10.0
libtpu: 0.0.40
codegen_flags: <defaults>
</compile_context>

<pallas_src>
import functools

import jax
import jax.numpy as jnp
from jax import lax
from jax.experimental import pallas as pl
from jax.experimental.pallas import tpu as pltpu


# ----------------------------- Pallas kernel -------------------------------

def _ln(x, g, b, eps):
    # One-pass LayerNorm statistics: var = E[x^2] - mu^2 (independent reductions).
    mu = jnp.mean(x, axis=-1, keepdims=True)
    ex2 = jnp.mean(x * x, axis=-1, keepdims=True)
    var = ex2 - mu * mu
    return (x - mu) * lax.rsqrt(var + eps) * g + b


def _encoder_kernel(
    emb_ref, mask_ref,
    emb_g_ref, emb_b_ref,
    wqkv_ref, bqkv_ref, wo_ref, bo_ref,
    ln1g_ref, ln1b_ref,
    w1_ref, b1_ref, w2_ref, b2_ref,
    ln2g_ref, ln2b_ref,
    pool_w_ref, pool_b_ref, out_w_ref, out_b_ref,
    logits_ref,
    h_scr,
    *, batch, seq, hidden, nh, dh, eps):
    """One grid step = one transformer layer over the WHOLE [B*S, H] batch.

    The hidden state is carried across the layer axis in the f32 VMEM scratch
    `h_scr` (never touches HBM).  The pooler + classifier run as an epilogue
    on the last layer step, writing a lane-dense (B, 128) logits block.
    """
    layer = pl.program_id(0)
    n_layers = pl.num_programs(0)

    # Seed the resident hidden state with the embedding LayerNorm at layer 0.
    @pl.when(layer == 0)
    def _():
        h_scr[...] = _ln(emb_ref[...].astype(jnp.float32),
                         emb_g_ref[...], emb_b_ref[...], eps)
        logits_ref[...] = jnp.zeros_like(logits_ref)

    h32 = h_scr[...]                                  # [B*S, H]  f32 (resident)
    h = h32.astype(jnp.bfloat16)

    # ---- fused QKV projection: [B*S, H] @ [H, 3H] (scale pre-folded in W_q) --
    qkv = jnp.dot(h, wqkv_ref[0],
                  preferred_element_type=jnp.float32) + bqkv_ref[0]
    qkv = qkv.astype(jnp.bfloat16)                    # [B*S, 3H]
    wo = wo_ref[0]                                    # [H, H] bf16
    m_all = mask_ref[...]                             # [B, S]  f32 additive

    # ---- multi-head self-attention (per-batch / per-head, unrolled) ----
    attn_rows = []
    for b in range(batch):
        qkv_b = qkv[b * seq:(b + 1) * seq, :]         # [S, 3H]
        # additive key-mask broadcast hoisted out of the head loop
        m_b = jnp.broadcast_to(m_all[b:b + 1, :], (seq, seq))
        acc_b = None
        for hd in range(nh):
            q = qkv_b[:, hd * dh:(hd + 1) * dh]                           # [S, DH]
            k = qkv_b[:, hidden + hd * dh:hidden + (hd + 1) * dh]         # [S, DH]
            v = qkv_b[:, 2 * hidden + hd * dh:2 * hidden + (hd + 1) * dh]  # [S, DH]
            # q @ k^T without materializing a transpose
            s = lax.dot_general(q, k, (((1,), (1,)), ((), ())),
                                preferred_element_type=jnp.float32) + m_b
            s = s - jnp.max(s, axis=-1, keepdims=True)
            p = jnp.exp(s)
            p = p * pl.reciprocal(jnp.sum(p, axis=-1, keepdims=True), approx=True)
            ctx = jnp.dot(p.astype(jnp.bfloat16), v,
                          preferred_element_type=jnp.float32)             # [S, DH]
            # per-head output-projection accumulation (no lane-misaligned concat)
            part = jnp.dot(ctx.astype(jnp.bfloat16),
                           wo[hd * dh:(hd + 1) * dh, :],
                           preferred_element_type=jnp.float32)            # [S, H]
            acc_b = part if acc_b is None else acc_b + part
        attn_rows.append(acc_b)
    attn = jnp.concatenate(attn_rows, axis=0) + bo_ref[0]                 # [B*S, H]

    # ---- residual + LayerNorm (f32) ----
    h1_32 = _ln(h32 + attn, ln1g_ref[0], ln1b_ref[0], eps)
    h1 = h1_32.astype(jnp.bfloat16)

    # ---- FFN (GELU) + residual + LayerNorm ----
    ff = jnp.dot(h1, w1_ref[0], preferred_element_type=jnp.float32) + b1_ref[0]
    # TODO(synk): BERT default is erf-GELU; tanh approximation used (EUP-friendly).
    ff = jax.nn.gelu(ff, approximate=True)
    ff2 = jnp.dot(ff.astype(jnp.bfloat16), w2_ref[0],
                  preferred_element_type=jnp.float32) + b2_ref[0]
    h2_32 = _ln(h1_32 + ff2, ln2g_ref[0], ln2b_ref[0], eps)
    h_scr[...] = h2_32

    # ---- fused pooler + Dropout(identity) + classifier epilogue ----
    @pl.when(layer == n_layers - 1)
    def _():
        # gather the [CLS] row of every batch element (rows b*S)
        cls = jnp.concatenate(
            [h2_32[b * seq:b * seq + 1, :] for b in range(batch)], axis=0)  # [B, H]
        pooled = jnp.tanh(
            jnp.dot(cls.astype(jnp.bfloat16), pool_w_ref[...],
                    preferred_element_type=jnp.float32) + pool_b_ref[...])
        # TODO(synk): training-mode dropout (p=0.3 stochastic mask) not applied;
        # eval semantics (identity).
        # lane-dense padded classifier: out_w padded to [H, 128] (col 0 is real)
        logits_ref[...] = (
            jnp.dot(pooled.astype(jnp.bfloat16), out_w_ref[...],
                    preferred_element_type=jnp.float32) + out_b_ref[...])


# --------------------------- Model (glue in JAX) ---------------------------

class Config:
    vocab = 64
    type_vocab = 2
    max_pos = 32
    hidden = 128          # scaled down from 768
    heads = 2
    head_dim = 64         # hidden // heads
    intermediate = 256
    layers = 2


def init_params(cfg, key):
    std = 0.02
    ks = iter(jax.random.split(key, 32))

    def normal(shape, dtype=jnp.bfloat16):
        return (std * jax.random.normal(next(ks), shape)).astype(dtype)

    L, H, I = cfg.layers, cfg.hidden, cfg.intermediate

    out_w = normal((H, 1), jnp.float32)
    out_w_pad = jnp.zeros((H, 128), jnp.float32).at[:, :1].set(out_w)
    out_b_pad = jnp.zeros((1, 128), jnp.float32)   # classifier bias (col 0)

    return {
        # embedding tables stay f32 (gathered in XLA, cast once before the kernel)
        "word_emb": normal((cfg.vocab, H), jnp.float32),
        "pos_emb": normal((cfg.max_pos, H), jnp.float32),
        "type_emb": normal((cfg.type_vocab, H), jnp.float32),
        "emb_ln_g": jnp.ones((1, H), jnp.float32),
        "emb_ln_b": jnp.zeros((1, H), jnp.float32),
        # per-layer weights stacked along a leading layer axis (streamed via BlockSpec)
        "wqkv": normal((L, H, 3 * H)),                       # bf16: wq|wk|wv
        "bqkv": jnp.zeros((L, 1, 3 * H), jnp.float32),
        "wo": normal((L, H, H)),                             # bf16
        "bo": jnp.zeros((L, 1, H), jnp.float32),
        "ln1_g": jnp.ones((L, 1, H), jnp.float32),
        "ln1_b": jnp.zeros((L, 1, H), jnp.float32),
        "w1": normal((L, H, I)),                             # bf16
        "b1": jnp.zeros((L, 1, I), jnp.float32),
        "w2": normal((L, I, H)),                             # bf16
        "b2": jnp.zeros((L, 1, H), jnp.float32),
        "ln2_g": jnp.ones((L, 1, H), jnp.float32),
        "ln2_b": jnp.zeros((L, 1, H), jnp.float32),
        "pool_w": normal((H, H)),                            # bf16
        "pool_b": jnp.zeros((1, H), jnp.float32),
        "out_w_pad": out_w_pad.astype(jnp.bfloat16),         # [H, 128], col 0 real
        "out_b_pad": out_b_pad,                              # [1, 128], col 0 real
    }


def text_classification_forward(params, ids, mask, token_type_ids, cfg):
    B, S = ids.shape
    H, I, L = cfg.hidden, cfg.intermediate, cfg.layers

    # ---- embeddings (table gathers are XLA glue), flattened to [B*S, H] ----
    pos = jnp.arange(S)
    emb = (jnp.take(params["word_emb"], ids, axis=0)
           + jnp.take(params["pos_emb"], pos, axis=0)[None, :, :]
           + jnp.take(params["type_emb"], token_type_ids, axis=0))   # [B, S, H] f32
    emb_flat = emb.reshape(B * S, H).astype(jnp.bfloat16)

    # additive attention mask, [B, S] f32 (broadcast over query rows in-kernel)
    mask_add = (1.0 - mask.astype(jnp.float32)) * -1e9

    # Fold the 1/sqrt(dh) attention scale into the Q projection (zero kernel cost).
    scale = 1.0 / (cfg.head_dim ** 0.5)
    wqkv = params["wqkv"].at[:, :, :H].multiply(scale)
    bqkv = params["bqkv"].at[:, :, :H].multiply(scale)

    kernel = functools.partial(
        _encoder_kernel, batch=B, seq=S, hidden=H, nh=cfg.heads,
        dh=cfg.head_dim, eps=1e-12)

    # One fused pallas_call: grid = (layers,).  Batch is folded into each step;
    # per-layer weights are streamed (and double-buffered) along the layer axis
    # exactly once.  Hidden state lives in VMEM scratch; only the lane-dense
    # (B, 128) padded logits block is written to HBM.
    logits_pad = pl.pallas_call(
        kernel,
        out_shape=jax.ShapeDtypeStruct((B, 128), jnp.float32),
        grid=(L,),
        in_specs=[
            pl.BlockSpec((B * S, H), lambda l: (0, 0)),          # emb_flat
            pl.BlockSpec((B, S), lambda l: (0, 0)),              # mask_add
            pl.BlockSpec((1, H), lambda l: (0, 0)),              # emb_ln_g
            pl.BlockSpec((1, H), lambda l: (0, 0)),              # emb_ln_b
            pl.BlockSpec((1, H, 3 * H), lambda l: (l, 0, 0)),    # wqkv
            pl.BlockSpec((1, 1, 3 * H), lambda l: (l, 0, 0)),    # bqkv
            pl.BlockSpec((1, H, H), lambda l: (l, 0, 0)),        # wo
            pl.BlockSpec((1, 1, H), lambda l: (l, 0, 0)),        # bo
            pl.BlockSpec((1, 1, H), lambda l: (l, 0, 0)),        # ln1_g
            pl.BlockSpec((1, 1, H), lambda l: (l, 0, 0)),        # ln1_b
            pl.BlockSpec((1, H, I), lambda l: (l, 0, 0)),        # w1
            pl.BlockSpec((1, 1, I), lambda l: (l, 0, 0)),        # b1
            pl.BlockSpec((1, I, H), lambda l: (l, 0, 0)),        # w2
            pl.BlockSpec((1, 1, H), lambda l: (l, 0, 0)),        # b2
            pl.BlockSpec((1, 1, H), lambda l: (l, 0, 0)),        # ln2_g
            pl.BlockSpec((1, 1, H), lambda l: (l, 0, 0)),        # ln2_b
            pl.BlockSpec((H, H), lambda l: (0, 0)),              # pool_w
            pl.BlockSpec((1, H), lambda l: (0, 0)),              # pool_b
            pl.BlockSpec((H, 128), lambda l: (0, 0)),            # out_w_pad
            pl.BlockSpec((1, 128), lambda l: (0, 0)),            # out_b_pad
        ],
        out_specs=pl.BlockSpec((B, 128), lambda l: (0, 0)),      # lane-dense logits
        scratch_shapes=[pltpu.VMEM((B * S, H), jnp.float32)],    # resident hidden
        compiler_params=pltpu.CompilerParams(
            dimension_semantics=("arbitrary",),
            vmem_limit_bytes=32 * 1024 * 1024),
    )(emb_flat, mask_add,
      params["emb_ln_g"], params["emb_ln_b"],
      wqkv, bqkv, params["wo"], params["bo"],
      params["ln1_g"], params["ln1_b"],
      params["w1"], params["b1"], params["w2"], params["b2"],
      params["ln2_g"], params["ln2_b"],
      params["pool_w"], params["pool_b"],
      params["out_w_pad"], params["out_b_pad"])

    return logits_pad[:, :1]                                     # [B, 1]


# --------------------------------- main ------------------------------------

if __name__ == "__main__":
    cfg = Config()
    B, S = 2, 8

    key = jax.random.PRNGKey(0)
    k_param, k_ids, k_tt = jax.random.split(key, 3)

    params = init_params(cfg, k_param)
    ids = jax.random.randint(k_ids, (B, S), 0, cfg.vocab, dtype=jnp.int32)
    mask = jnp.ones((B, S), dtype=jnp.int32)
    token_type_ids = jnp.zeros((B, S), dtype=jnp.int32)

    fwd = jax.jit(functools.partial(text_classification_forward, cfg=cfg))
    out = fwd(params, ids, mask, token_type_ids)
    out = jax.block_until_ready(out)

    assert out.shape == (B, 1), out.shape
    assert out.dtype == jnp.float32
    assert bool(jnp.all(jnp.isfinite(out)))
    print("KERNEL_OK")
</pallas_src>

<mosaic_0001>
module attributes {stable_mosaic.version = 11 : i64} {
  func.func @_encoder_kernel(%arg0: i32, %arg1: memref<16x128xbf16, #tpu.memory_space<vmem>>, %arg2: memref<2x8xf32, #tpu.memory_space<vmem>>, %arg3: memref<1x128xf32, #tpu.memory_space<vmem>>, %arg4: memref<1x128xf32, #tpu.memory_space<vmem>>, %arg5: memref<1x128x384xbf16, #tpu.memory_space<vmem>>, %arg6: memref<1x1x384xf32, #tpu.memory_space<vmem>>, %arg7: memref<1x128x128xbf16, #tpu.memory_space<vmem>>, %arg8: memref<1x1x128xf32, #tpu.memory_space<vmem>>, %arg9: memref<1x1x128xf32, #tpu.memory_space<vmem>>, %arg10: memref<1x1x128xf32, #tpu.memory_space<vmem>>, %arg11: memref<1x128x256xbf16, #tpu.memory_space<vmem>>, %arg12: memref<1x1x256xf32, #tpu.memory_space<vmem>>, %arg13: memref<1x256x128xbf16, #tpu.memory_space<vmem>>, %arg14: memref<1x1x128xf32, #tpu.memory_space<vmem>>, %arg15: memref<1x1x128xf32, #tpu.memory_space<vmem>>, %arg16: memref<1x1x128xf32, #tpu.memory_space<vmem>>, %arg17: memref<128x128xbf16, #tpu.memory_space<vmem>>, %arg18: memref<1x128xf32, #tpu.memory_space<vmem>>, %arg19: memref<128x128xbf16, #tpu.memory_space<vmem>>, %arg20: memref<1x128xf32, #tpu.memory_space<vmem>>, %arg21: memref<2x128xf32, #tpu.memory_space<vmem>>, %arg22: memref<16x128xf32, #tpu.memory_space<vmem>>) attributes {dimension_semantics = [#tpu.dimension_semantics<arbitrary>], iteration_bounds = array<i64: 2>, scalar_prefetch = 0 : i64, scratch_operands = 1 : i64, tpu.core_type = #tpu.core_type<tc>, window_params = [{pipeline_mode = #tpu.pipeline_mode<synchronous>, transform_indices = @transform_0, window_bounds = array<i64: 16, 128>}, {pipeline_mode = #tpu.pipeline_mode<synchronous>, transform_indices = @transform_1, window_bounds = array<i64: 2, 8>}, {pipeline_mode = #tpu.pipeline_mode<synchronous>, transform_indices = @transform_2, window_bounds = array<i64: 1, 128>}, {pipeline_mode = #tpu.pipeline_mode<synchronous>, transform_indices = @transform_3, window_bounds = array<i64: 1, 128>}, {transform_indices = @transform_4, window_bounds = array<i64: 1, 128, 384>}, {transform_indices = @transform_5, window_bounds = array<i64: 1, 1, 384>}, {transform_indices = @transform_6, window_bounds = array<i64: 1, 128, 128>}, {transform_indices = @transform_7, window_bounds = array<i64: 1, 1, 128>}, {transform_indices = @transform_8, window_bounds = array<i64: 1, 1, 128>}, {transform_indices = @transform_9, window_bounds = array<i64: 1, 1, 128>}, {transform_indices = @transform_10, window_bounds = array<i64: 1, 128, 256>}, {transform_indices = @transform_11, window_bounds = array<i64: 1, 1, 256>}, {transform_indices = @transform_12, window_bounds = array<i64: 1, 256, 128>}, {transform_indices = @transform_13, window_bounds = array<i64: 1, 1, 128>}, {transform_indices = @transform_14, window_bounds = array<i64: 1, 1, 128>}, {transform_indices = @transform_15, window_bounds = array<i64: 1, 1, 128>}, {pipeline_mode = #tpu.pipeline_mode<synchronous>, transform_indices = @transform_16, window_bounds = array<i64: 128, 128>}, {pipeline_mode = #tpu.pipeline_mode<synchronous>, transform_indices = @transform_17, window_bounds = array<i64: 1, 128>}, {pipeline_mode = #tpu.pipeline_mode<synchronous>, transform_indices = @transform_18, window_bounds = array<i64: 128, 128>}, {pipeline_mode = #tpu.pipeline_mode<synchronous>, transform_indices = @transform_19, window_bounds = array<i64: 1, 128>}, {pipeline_mode = #tpu.pipeline_mode<synchronous>, transform_indices = @transform_20, window_bounds = array<i64: 2, 128>}]} {
    %c0_i32 = arith.constant 0 : i32
    %0 = arith.cmpi eq, %arg0, %c0_i32 : i32
    %1 = arith.extui %0 : i1 to i32
    %c0_i32_0 = arith.constant 0 : i32
    %2 = arith.cmpi ne, %1, %c0_i32_0 : i32
    scf.if %2 {
      %c0_79 = arith.constant 0 : index
      %c0_80 = arith.constant 0 : index
      %198 = vector.load %arg1[%c0_79, %c0_80] : memref<16x128xbf16, #tpu.memory_space<vmem>>, vector<16x128xbf16>
      %199 = arith.extf %198 : vector<16x128xbf16> to vector<16x128xf32>
      %c0_81 = arith.constant 0 : index
      %c0_82 = arith.constant 0 : index
      %200 = vector.load %arg3[%c0_81, %c0_82] : memref<1x128xf32, #tpu.memory_space<vmem>>, vector<1x128xf32>
      %c0_83 = arith.constant 0 : index
      %c0_84 = arith.constant 0 : index
      %201 = vector.load %arg4[%c0_83, %c0_84] : memref<1x128xf32, #tpu.memory_space<vmem>>, vector<1x128xf32>
      %cst_85 = arith.constant dense<0.000000e+00> : vector<16xf32>
      %202 = vector.multi_reduction <add>, %199, %cst_85 [1] : vector<16x128xf32> to vector<16xf32>
      %203 = vector.shape_cast %202 : vector<16xf32> to vector<16x1xf32>
      %cst_86 = arith.constant 1.280000e+02 : f32
      %204 = vector.broadcast %cst_86 : f32 to vector<16x1xf32>
      %205 = arith.divf %203, %204 : vector<16x1xf32>
      %206 = arith.mulf %199, %199 : vector<16x128xf32>
      %cst_87 = arith.constant dense<0.000000e+00> : vector<16xf32>
      %207 = vector.multi_reduction <add>, %206, %cst_87 [1] : vector<16x128xf32> to vector<16xf32>
      %208 = vector.shape_cast %207 : vector<16xf32> to vector<16x1xf32>
      %cst_88 = arith.constant 1.280000e+02 : f32
      %209 = vector.broadcast %cst_88 : f32 to vector<16x1xf32>
      %210 = arith.divf %208, %209 : vector<16x1xf32>
      %211 = arith.mulf %205, %205 : vector<16x1xf32>
      %212 = arith.subf %210, %211 : vector<16x1xf32>
      %213 = vector.broadcast %205 : vector<16x1xf32> to vector<16x128xf32>
      %214 = arith.subf %199, %213 : vector<16x128xf32>
      %cst_89 = arith.constant 9.99999996E-13 : f32
      %215 = vector.broadcast %cst_89 : f32 to vector<16x1xf32>
      %216 = arith.addf %212, %215 : vector<16x1xf32>
      %217 = math.rsqrt %216 : vector<16x1xf32>
      %218 = vector.broadcast %217 : vector<16x1xf32> to vector<16x128xf32>
      %219 = arith.mulf %214, %218 : vector<16x128xf32>
      %220 = vector.broadcast %200 : vector<1x128xf32> to vector<16x128xf32>
      %221 = arith.mulf %219, %220 : vector<16x128xf32>
      %222 = vector.broadcast %201 : vector<1x128xf32> to vector<16x128xf32>
      %223 = arith.addf %221, %222 : vector<16x128xf32>
      %c0_90 = arith.constant 0 : index
      %c0_91 = arith.constant 0 : index
      %224 = vector.load %arg22[%c0_90, %c0_91] : memref<16x128xf32, #tpu.memory_space<vmem>>, vector<16x128xf32>
      tpu.vector_store %arg22[%c0_90, %c0_91], %223 {strides = array<i32>} : memref<16x128xf32, #tpu.memory_space<vmem>>, vector<16x128xf32>,
      %cst_92 = arith.constant 0.000000e+00 : f32
      %225 = vector.broadcast %cst_92 : f32 to vector<2x128xf32>
      %c0_93 = arith.constant 0 : index
      %c0_94 = arith.constant 0 : index
      %226 = vector.load %arg21[%c0_93, %c0_94] : memref<2x128xf32, #tpu.memory_space<vmem>>, vector<2x128xf32>
      tpu.vector_store %arg21[%c0_93, %c0_94], %225 {strides = array<i32>} : memref<2x128xf32, #tpu.memory_space<vmem>>, vector<2x128xf32>,
    } else {
    }
    %c0 = arith.constant 0 : index
    %c0_1 = arith.constant 0 : index
    %3 = vector.load %arg22[%c0, %c0_1] : memref<16x128xf32, #tpu.memory_space<vmem>>, vector<16x128xf32>
    %4 = arith.truncf %3 : vector<16x128xf32> to vector<16x128xbf16>
    %c0_2 = arith.constant 0 : index
    %c0_3 = arith.constant 0 : index
    %c0_4 = arith.constant 0 : index
    %5 = vector.load %arg5[%c0_2, %c0_3, %c0_4] : memref<1x128x384xbf16, #tpu.memory_space<vmem>>, vector<1x128x384xbf16>
    %6 = vector.shape_cast %5 : vector<1x128x384xbf16> to vector<128x384xbf16>
    %cst = arith.constant dense<0.000000e+00> : vector<16x384xf32>
    %7 = tpu.matmul %4, %6, %cst {dimension_numbers = #tpu.dot_dimension_numbers<[1], [0], [0], [1], [0, 0, 1, 1], [], []>} : vector<16x128xbf16>, vector<128x384xbf16>, vector<16x384xf32> -> vector<16x384xf32>
    %c0_5 = arith.constant 0 : index
    %c0_6 = arith.constant 0 : index
    %c0_7 = arith.constant 0 : index
    %8 = vector.load %arg6[%c0_5, %c0_6, %c0_7] : memref<1x1x384xf32, #tpu.memory_space<vmem>>, vector<1x1x384xf32>
    %9 = vector.shape_cast %8 : vector<1x1x384xf32> to vector<1x384xf32>
    %10 = vector.broadcast %9 : vector<1x384xf32> to vector<16x384xf32>
    %11 = arith.addf %7, %10 : vector<16x384xf32>
    %12 = arith.truncf %11 : vector<16x384xf32> to vector<16x384xbf16>
    %c0_8 = arith.constant 0 : index
    %c0_9 = arith.constant 0 : index
    %c0_10 = arith.constant 0 : index
    %13 = vector.load %arg7[%c0_8, %c0_9, %c0_10] : memref<1x128x128xbf16, #tpu.memory_space<vmem>>, vector<1x128x128xbf16>
    %14 = vector.shape_cast %13 : vector<1x128x128xbf16> to vector<128x128xbf16>
    %c0_11 = arith.constant 0 : index
    %c0_12 = arith.constant 0 : index
    %15 = vector.load %arg2[%c0_11, %c0_12] : memref<2x8xf32, #tpu.memory_space<vmem>>, vector<2x8xf32>
    %16 = vector.extract_strided_slice %12 {offsets = [0, 0], sizes = [8, 384], strides = [1, 1]} : vector<16x384xbf16> to vector<8x384xbf16>
    %17 = vector.extract_strided_slice %15 {offsets = [0, 0], sizes = [1, 8], strides = [1, 1]} : vector<2x8xf32> to vector<1x8xf32>
    %18 = vector.shape_cast %17 : vector<1x8xf32> to vector<1x8xf32>
    %19 = vector.broadcast %18 : vector<1x8xf32> to vector<8x8xf32>
    %20 = vector.extract_strided_slice %16 {offsets = [0, 0], sizes = [8, 64], strides = [1, 1]} : vector<8x384xbf16> to vector<8x64xbf16>
    %21 = vector.extract_strided_slice %16 {offsets = [0, 128], sizes = [8, 64], strides = [1, 1]} : vector<8x384xbf16> to vector<8x64xbf16>
    %22 = vector.extract_strided_slice %16 {offsets = [0, 256], sizes = [8, 64], strides = [1, 1]} : vector<8x384xbf16> to vector<8x64xbf16>
    %cst_13 = arith.constant dense<0.000000e+00> : vector<8x8xf32>
    %23 = tpu.matmul %20, %21, %cst_13 {dimension_numbers = #tpu.dot_dimension_numbers<[1], [1], [0], [0], [0, 0, 1, 0], [], []>} : vector<8x64xbf16>, vector<8x64xbf16>, vector<8x8xf32> -> vector<8x8xf32>
    %24 = arith.addf %23, %19 : vector<8x8xf32>
    %cst_14 = arith.constant dense<0xFF800000> : vector<8xf32>
    %25 = vector.multi_reduction <maximumf>, %24, %cst_14 [1] : vector<8x8xf32> to vector<8xf32>
    %26 = vector.shape_cast %25 : vector<8xf32> to vector<8x1xf32>
    %27 = vector.broadcast %26 : vector<8x1xf32> to vector<8x8xf32>
    %28 = arith.subf %24, %27 : vector<8x8xf32>
    %29 = math.exp %28 : vector<8x8xf32>
    %cst_15 = arith.constant dense<0.000000e+00> : vector<8xf32>
    %30 = vector.multi_reduction <add>, %29, %cst_15 [1] : vector<8x8xf32> to vector<8xf32>
    %31 = vector.shape_cast %30 : vector<8xf32> to vector<8x1xf32>
    %32 = tpu.reciprocal %31 {approx = true} : vector<8x1xf32> -> vector<8x1xf32>
    %33 = vector.broadcast %32 : vector<8x1xf32> to vector<8x8xf32>
    %34 = arith.mulf %29, %33 : vector<8x8xf32>
    %35 = arith.truncf %34 : vector<8x8xf32> to vector<8x8xbf16>
    %cst_16 = arith.constant dense<0.000000e+00> : vector<8x64xf32>
    %36 = tpu.matmul %35, %22, %cst_16 {dimension_numbers = #tpu.dot_dimension_numbers<[1], [0], [0], [1], [0, 0, 1, 1], [], []>} : vector<8x8xbf16>, vector<8x64xbf16>, vector<8x64xf32> -> vector<8x64xf32>
    %37 = arith.truncf %36 : vector<8x64xf32> to vector<8x64xbf16>
    %38 = vector.extract_strided_slice %14 {offsets = [0, 0], sizes = [64, 128], strides = [1, 1]} : vector<128x128xbf16> to vector<64x128xbf16>
    %cst_17 = arith.constant dense<0.000000e+00> : vector<8x128xf32>
    %39 = tpu.matmul %37, %38, %cst_17 {dimension_numbers = #tpu.dot_dimension_numbers<[1], [0], [0], [1], [0, 0, 1, 1], [], []>} : vector<8x64xbf16>, vector<64x128xbf16>, vector<8x128xf32> -> vector<8x128xf32>
    %40 = vector.extract_strided_slice %16 {offsets = [0, 64], sizes = [8, 64], strides = [1, 1]} : vector<8x384xbf16> to vector<8x64xbf16>
    %41 = vector.extract_strided_slice %16 {offsets = [0, 192], sizes = [8, 64], strides = [1, 1]} : vector<8x384xbf16> to vector<8x64xbf16>
    %42 = vector.extract_strided_slice %16 {offsets = [0, 320], sizes = [8, 64], strides = [1, 1]} : vector<8x384xbf16> to vector<8x64xbf16>
    %cst_18 = arith.constant dense<0.000000e+00> : vector<8x8xf32>
    %43 = tpu.matmul %40, %41, %cst_18 {dimension_numbers = #tpu.dot_dimension_numbers<[1], [1], [0], [0], [0, 0, 1, 0], [], []>} : vector<8x64xbf16>, vector<8x64xbf16>, vector<8x8xf32> -> vector<8x8xf32>
    %44 = arith.addf %43, %19 : vector<8x8xf32>
    %cst_19 = arith.constant dense<0xFF800000> : vector<8xf32>
    %45 = vector.multi_reduction <maximumf>, %44, %cst_19 [1] : vector<8x8xf32> to vector<8xf32>
    %46 = vector.shape_cast %45 : vector<8xf32> to vector<8x1xf32>
    %47 = vector.broadcast %46 : vector<8x1xf32> to vector<8x8xf32>
    %48 = arith.subf %44, %47 : vector<8x8xf32>
    %49 = math.exp %48 : vector<8x8xf32>
    %cst_20 = arith.constant dense<0.000000e+00> : vector<8xf32>
    %50 = vector.multi_reduction <add>, %49, %cst_20 [1] : vector<8x8xf32> to vector<8xf32>
    %51 = vector.shape_cast %50 : vector<8xf32> to vector<8x1xf32>
    %52 = tpu.reciprocal %51 {approx = true} : vector<8x1xf32> -> vector<8x1xf32>
    %53 = vector.broadcast %52 : vector<8x1xf32> to vector<8x8xf32>
    %54 = arith.mulf %49, %53 : vector<8x8xf32>
    %55 = arith.truncf %54 : vector<8x8xf32> to vector<8x8xbf16>
    %cst_21 = arith.constant dense<0.000000e+00> : vector<8x64xf32>
    %56 = tpu.matmul %55, %42, %cst_21 {dimension_numbers = #tpu.dot_dimension_numbers<[1], [0], [0], [1], [0, 0, 1, 1], [], []>} : vector<8x8xbf16>, vector<8x64xbf16>, vector<8x64xf32> -> vector<8x64xf32>
    %57 = arith.truncf %56 : vector<8x64xf32> to vector<8x64xbf16>
    %58 = vector.extract_strided_slice %14 {offsets = [64, 0], sizes = [64, 128], strides = [1, 1]} : vector<128x128xbf16> to vector<64x128xbf16>
    %cst_22 = arith.constant dense<0.000000e+00> : vector<8x128xf32>
    %59 = tpu.matmul %57, %58, %cst_22 {dimension_numbers = #tpu.dot_dimension_numbers<[1], [0], [0], [1], [0, 0, 1, 1], [], []>} : vector<8x64xbf16>, vector<64x128xbf16>, vector<8x128xf32> -> vector<8x128xf32>
    %60 = arith.addf %39, %59 : vector<8x128xf32>
    %61 = vector.extract_strided_slice %12 {offsets = [8, 0], sizes = [8, 384], strides = [1, 1]} : vector<16x384xbf16> to vector<8x384xbf16>
    %62 = vector.extract_strided_slice %15 {offsets = [1, 0], sizes = [1, 8], strides = [1, 1]} : vector<2x8xf32> to vector<1x8xf32>
    %63 = vector.shape_cast %62 : vector<1x8xf32> to vector<1x8xf32>
    %64 = vector.broadcast %63 : vector<1x8xf32> to vector<8x8xf32>
    %65 = vector.extract_strided_slice %61 {offsets = [0, 0], sizes = [8, 64], strides = [1, 1]} : vector<8x384xbf16> to vector<8x64xbf16>
    %66 = vector.extract_strided_slice %61 {offsets = [0, 128], sizes = [8, 64], strides = [1, 1]} : vector<8x384xbf16> to vector<8x64xbf16>
    %67 = vector.extract_strided_slice %61 {offsets = [0, 256], sizes = [8, 64], strides = [1, 1]} : vector<8x384xbf16> to vector<8x64xbf16>
    %cst_23 = arith.constant dense<0.000000e+00> : vector<8x8xf32>
    %68 = tpu.matmul %65, %66, %cst_23 {dimension_numbers = #tpu.dot_dimension_numbers<[1], [1], [0], [0], [0, 0, 1, 0], [], []>} : vector<8x64xbf16>, vector<8x64xbf16>, vector<8x8xf32> -> vector<8x8xf32>
    %69 = arith.addf %68, %64 : vector<8x8xf32>
    %cst_24 = arith.constant dense<0xFF800000> : vector<8xf32>
    %70 = vector.multi_reduction <maximumf>, %69, %cst_24 [1] : vector<8x8xf32> to vector<8xf32>
    %71 = vector.shape_cast %70 : vector<8xf32> to vector<8x1xf32>
    %72 = vector.broadcast %71 : vector<8x1xf32> to vector<8x8xf32>
    %73 = arith.subf %69, %72 : vector<8x8xf32>
    %74 = math.exp %73 : vector<8x8xf32>
    %cst_25 = arith.constant dense<0.000000e+00> : vector<8xf32>
    %75 = vector.multi_reduction <add>, %74, %cst_25 [1] : vector<8x8xf32> to vector<8xf32>
    %76 = vector.shape_cast %75 : vector<8xf32> to vector<8x1xf32>
    %77 = tpu.reciprocal %76 {approx = true} : vector<8x1xf32> -> vector<8x1xf32>
    %78 = vector.broadcast %77 : vector<8x1xf32> to vector<8x8xf32>
    %79 = arith.mulf %74, %78 : vector<8x8xf32>
    %80 = arith.truncf %79 : vector<8x8xf32> to vector<8x8xbf16>
    %cst_26 = arith.constant dense<0.000000e+00> : vector<8x64xf32>
    %81 = tpu.matmul %80, %67, %cst_26 {dimension_numbers = #tpu.dot_dimension_numbers<[1], [0], [0], [1], [0, 0, 1, 1], [], []>} : vector<8x8xbf16>, vector<8x64xbf16>, vector<8x64xf32> -> vector<8x64xf32>
    %82 = arith.truncf %81 : vector<8x64xf32> to vector<8x64xbf16>
    %83 = vector.extract_strided_slice %14 {offsets = [0, 0], sizes = [64, 128], strides = [1, 1]} : vector<128x128xbf16> to vector<64x128xbf16>
    %cst_27 = arith.constant dense<0.000000e+00> : vector<8x128xf32>
    %84 = tpu.matmul %82, %83, %cst_27 {dimension_numbers = #tpu.dot_dimension_numbers<[1], [0], [0], [1], [0, 0, 1, 1], [], []>} : vector<8x64xbf16>, vector<64x128xbf16>, vector<8x128xf32> -> vector<8x128xf32>
    %85 = vector.extract_strided_slice %61 {offsets = [0, 64], sizes = [8, 64], strides = [1, 1]} : vector<8x384xbf16> to vector<8x64xbf16>
    %86 = vector.extract_strided_slice %61 {offsets = [0, 192], sizes = [8, 64], strides = [1, 1]} : vector<8x384xbf16> to vector<8x64xbf16>
    %87 = vector.extract_strided_slice %61 {offsets = [0, 320], sizes = [8, 64], strides = [1, 1]} : vector<8x384xbf16> to vector<8x64xbf16>
    %cst_28 = arith.constant dense<0.000000e+00> : vector<8x8xf32>
    %88 = tpu.matmul %85, %86, %cst_28 {dimension_numbers = #tpu.dot_dimension_numbers<[1], [1], [0], [0], [0, 0, 1, 0], [], []>} : vector<8x64xbf16>, vector<8x64xbf16>, vector<8x8xf32> -> vector<8x8xf32>
    %89 = arith.addf %88, %64 : vector<8x8xf32>
    %cst_29 = arith.constant dense<0xFF800000> : vector<8xf32>
    %90 = vector.multi_reduction <maximumf>, %89, %cst_29 [1] : vector<8x8xf32> to vector<8xf32>
    %91 = vector.shape_cast %90 : vector<8xf32> to vector<8x1xf32>
    %92 = vector.broadcast %91 : vector<8x1xf32> to vector<8x8xf32>
    %93 = arith.subf %89, %92 : vector<8x8xf32>
    %94 = math.exp %93 : vector<8x8xf32>
    %cst_30 = arith.constant dense<0.000000e+00> : vector<8xf32>
    %95 = vector.multi_reduction <add>, %94, %cst_30 [1] : vector<8x8xf32> to vector<8xf32>
    %96 = vector.shape_cast %95 : vector<8xf32> to vector<8x1xf32>
    %97 = tpu.reciprocal %96 {approx = true} : vector<8x1xf32> -> vector<8x1xf32>
    %98 = vector.broadcast %97 : vector<8x1xf32> to vector<8x8xf32>
    %99 = arith.mulf %94, %98 : vector<8x8xf32>
    %100 = arith.truncf %99 : vector<8x8xf32> to vector<8x8xbf16>
    %cst_31 = arith.constant dense<0.000000e+00> : vector<8x64xf32>
    %101 = tpu.matmul %100, %87, %cst_31 {dimension_numbers = #tpu.dot_dimension_numbers<[1], [0], [0], [1], [0, 0, 1, 1], [], []>} : vector<8x8xbf16>, vector<8x64xbf16>, vector<8x64xf32> -> vector<8x64xf32>
    %102 = arith.truncf %101 : vector<8x64xf32> to vector<8x64xbf16>
    %103 = vector.extract_strided_slice %14 {offsets = [64, 0], sizes = [64, 128], strides = [1, 1]} : vector<128x128xbf16> to vector<64x128xbf16>
    %cst_32 = arith.constant dense<0.000000e+00> : vector<8x128xf32>
    %104 = tpu.matmul %102, %103, %cst_32 {dimension_numbers = #tpu.dot_dimension_numbers<[1], [0], [0], [1], [0, 0, 1, 1], [], []>} : vector<8x64xbf16>, vector<64x128xbf16>, vector<8x128xf32> -> vector<8x128xf32>
    %105 = arith.addf %84, %104 : vector<8x128xf32>
    %106 = tpu.concatenate %60, %105 in 0 : vector<8x128xf32>, vector<8x128xf32> -> vector<16x128xf32>
    %c0_33 = arith.constant 0 : index
    %c0_34 = arith.constant 0 : index
    %c0_35 = arith.constant 0 : index
    %107 = vector.load %arg8[%c0_33, %c0_34, %c0_35] : memref<1x1x128xf32, #tpu.memory_space<vmem>>, vector<1x1x128xf32>
    %108 = vector.shape_cast %107 : vector<1x1x128xf32> to vector<1x128xf32>
    %109 = vector.broadcast %108 : vector<1x128xf32> to vector<16x128xf32>
    %110 = arith.addf %106, %109 : vector<16x128xf32>
    %111 = arith.addf %3, %110 : vector<16x128xf32>
    %c0_36 = arith.constant 0 : index
    %c0_37 = arith.constant 0 : index
    %c0_38 = arith.constant 0 : index
    %112 = vector.load %arg9[%c0_36, %c0_37, %c0_38] : memref<1x1x128xf32, #tpu.memory_space<vmem>>, vector<1x1x128xf32>
    %113 = vector.shape_cast %112 : vector<1x1x128xf32> to vector<1x128xf32>
    %c0_39 = arith.constant 0 : index
    %c0_40 = arith.constant 0 : index
    %c0_41 = arith.constant 0 : index
    %114 = vector.load %arg10[%c0_39, %c0_40, %c0_41] : memref<1x1x128xf32, #tpu.memory_space<vmem>>, vector<1x1x128xf32>
    %115 = vector.shape_cast %114 : vector<1x1x128xf32> to vector<1x128xf32>
    %cst_42 = arith.constant dense<0.000000e+00> : vector<16xf32>
    %116 = vector.multi_reduction <add>, %111, %cst_42 [1] : vector<16x128xf32> to vector<16xf32>
    %117 = vector.shape_cast %116 : vector<16xf32> to vector<16x1xf32>
    %cst_43 = arith.constant 1.280000e+02 : f32
    %118 = vector.broadcast %cst_43 : f32 to vector<16x1xf32>
    %119 = arith.divf %117, %118 : vector<16x1xf32>
    %120 = arith.mulf %111, %111 : vector<16x128xf32>
    %cst_44 = arith.constant dense<0.000000e+00> : vector<16xf32>
    %121 = vector.multi_reduction <add>, %120, %cst_44 [1] : vector<16x128xf32> to vector<16xf32>
    %122 = vector.shape_cast %121 : vector<16xf32> to vector<16x1xf32>
    %cst_45 = arith.constant 1.280000e+02 : f32
    %123 = vector.broadcast %cst_45 : f32 to vector<16x1xf32>
    %124 = arith.divf %122, %123 : vector<16x1xf32>
    %125 = arith.mulf %119, %119 : vector<16x1xf32>
    %126 = arith.subf %124, %125 : vector<16x1xf32>
    %127 = vector.broadcast %119 : vector<16x1xf32> to vector<16x128xf32>
    %128 = arith.subf %111, %127 : vector<16x128xf32>
    %cst_46 = arith.constant 9.99999996E-13 : f32
    %129 = vector.broadcast %cst_46 : f32 to vector<16x1xf32>
    %130 = arith.addf %126, %129 : vector<16x1xf32>
    %131 = math.rsqrt %130 : vector<16x1xf32>
    %132 = vector.broadcast %131 : vector<16x1xf32> to vector<16x128xf32>
    %133 = arith.mulf %128, %132 : vector<16x128xf32>
    %134 = vector.broadcast %113 : vector<1x128xf32> to vector<16x128xf32>
    %135 = arith.mulf %133, %134 : vector<16x128xf32>
    %136 = vector.broadcast %115 : vector<1x128xf32> to vector<16x128xf32>
    %137 = arith.addf %135, %136 : vector<16x128xf32>
    %138 = arith.truncf %137 : vector<16x128xf32> to vector<16x128xbf16>
    %c0_47 = arith.constant 0 : index
    %c0_48 = arith.constant 0 : index
    %c0_49 = arith.constant 0 : index
    %139 = vector.load %arg11[%c0_47, %c0_48, %c0_49] : memref<1x128x256xbf16, #tpu.memory_space<vmem>>, vector<1x128x256xbf16>
    %140 = vector.shape_cast %139 : vector<1x128x256xbf16> to vector<128x256xbf16>
    %cst_50 = arith.constant dense<0.000000e+00> : vector<16x256xf32>
    %141 = tpu.matmul %138, %140, %cst_50 {dimension_numbers = #tpu.dot_dimension_numbers<[1], [0], [0], [1], [0, 0, 1, 1], [], []>} : vector<16x128xbf16>, vector<128x256xbf16>, vector<16x256xf32> -> vector<16x256xf32>
    %c0_51 = arith.constant 0 : index
    %c0_52 = arith.constant 0 : index
    %c0_53 = arith.constant 0 : index
    %142 = vector.load %arg12[%c0_51, %c0_52, %c0_53] : memref<1x1x256xf32, #tpu.memory_space<vmem>>, vector<1x1x256xf32>
    %143 = vector.shape_cast %142 : vector<1x1x256xf32> to vector<1x256xf32>
    %144 = vector.broadcast %143 : vector<1x256xf32> to vector<16x256xf32>
    %145 = arith.addf %141, %144 : vector<16x256xf32>
    %146 = arith.mulf %145, %145 : vector<16x256xf32>
    %147 = arith.mulf %145, %146 : vector<16x256xf32>
    %cst_54 = arith.constant 4.471500e-02 : f32
    %148 = vector.broadcast %cst_54 : f32 to vector<16x256xf32>
    %149 = arith.mulf %148, %147 : vector<16x256xf32>
    %150 = arith.addf %145, %149 : vector<16x256xf32>
    %cst_55 = arith.constant 0.797884583 : f32
    %151 = vector.broadcast %cst_55 : f32 to vector<16x256xf32>
    %152 = arith.mulf %151, %150 : vector<16x256xf32>
    %153 = math.tanh %152 : vector<16x256xf32>
    %cst_56 = arith.constant 1.000000e+00 : f32
    %154 = vector.broadcast %cst_56 : f32 to vector<16x256xf32>
    %155 = arith.addf %154, %153 : vector<16x256xf32>
    %cst_57 = arith.constant 5.000000e-01 : f32
    %156 = vector.broadcast %cst_57 : f32 to vector<16x256xf32>
    %157 = arith.mulf %156, %155 : vector<16x256xf32>
    %158 = arith.mulf %145, %157 : vector<16x256xf32>
    %159 = arith.truncf %158 : vector<16x256xf32> to vector<16x256xbf16>
    %c0_58 = arith.constant 0 : index
    %c0_59 = arith.constant 0 : index
    %c0_60 = arith.constant 0 : index
    %160 = vector.load %arg13[%c0_58, %c0_59, %c0_60] : memref<1x256x128xbf16, #tpu.memory_space<vmem>>, vector<1x256x128xbf16>
    %161 = vector.shape_cast %160 : vector<1x256x128xbf16> to vector<256x128xbf16>
    %cst_61 = arith.constant dense<0.000000e+00> : vector<16x128xf32>
    %162 = tpu.matmul %159, %161, %cst_61 {dimension_numbers = #tpu.dot_dimension_numbers<[1], [0], [0], [1], [0, 0, 1, 1], [], []>} : vector<16x256xbf16>, vector<256x128xbf16>, vector<16x128xf32> -> vector<16x128xf32>
    %c0_62 = arith.constant 0 : index
    %c0_63 = arith.constant 0 : index
    %c0_64 = arith.constant 0 : index
    %163 = vector.load %arg14[%c0_62, %c0_63, %c0_64] : memref<1x1x128xf32, #tpu.memory_space<vmem>>, vector<1x1x128xf32>
    %164 = vector.shape_cast %163 : vector<1x1x128xf32> to vector<1x128xf32>
    %165 = vector.broadcast %164 : vector<1x128xf32> to vector<16x128xf32>
    %166 = arith.addf %162, %165 : vector<16x128xf32>
    %167 = arith.addf %137, %166 : vector<16x128xf32>
    %c0_65 = arith.constant 0 : index
    %c0_66 = arith.constant 0 : index
    %c0_67 = arith.constant 0 : index
    %168 = vector.load %arg15[%c0_65, %c0_66, %c0_67] : memref<1x1x128xf32, #tpu.memory_space<vmem>>, vector<1x1x128xf32>
    %169 = vector.shape_cast %168 : vector<1x1x128xf32> to vector<1x128xf32>
    %c0_68 = arith.constant 0 : index
    %c0_69 = arith.constant 0 : index
    %c0_70 = arith.constant 0 : index
    %170 = vector.load %arg16[%c0_68, %c0_69, %c0_70] : memref<1x1x128xf32, #tpu.memory_space<vmem>>, vector<1x1x128xf32>
    %171 = vector.shape_cast %170 : vector<1x1x128xf32> to vector<1x128xf32>
    %cst_71 = arith.constant dense<0.000000e+00> : vector<16xf32>
    %172 = vector.multi_reduction <add>, %167, %cst_71 [1] : vector<16x128xf32> to vector<16xf32>
    %173 = vector.shape_cast %172 : vector<16xf32> to vector<16x1xf32>
    %cst_72 = arith.constant 1.280000e+02 : f32
    %174 = vector.broadcast %cst_72 : f32 to vector<16x1xf32>
    %175 = arith.divf %173, %174 : vector<16x1xf32>
    %176 = arith.mulf %167, %167 : vector<16x128xf32>
    %cst_73 = arith.constant dense<0.000000e+00> : vector<16xf32>
    %177 = vector.multi_reduction <add>, %176, %cst_73 [1] : vector<16x128xf32> to vector<16xf32>
    %178 = vector.shape_cast %177 : vector<16xf32> to vector<16x1xf32>
    %cst_74 = arith.constant 1.280000e+02 : f32
    %179 = vector.broadcast %cst_74 : f32 to vector<16x1xf32>
    %180 = arith.divf %178, %179 : vector<16x1xf32>
    %181 = arith.mulf %175, %175 : vector<16x1xf32>
    %182 = arith.subf %180, %181 : vector<16x1xf32>
    %183 = vector.broadcast %175 : vector<16x1xf32> to vector<16x128xf32>
    %184 = arith.subf %167, %183 : vector<16x128xf32>
    %cst_75 = arith.constant 9.99999996E-13 : f32
    %185 = vector.broadcast %cst_75 : f32 to vector<16x1xf32>
    %186 = arith.addf %182, %185 : vector<16x1xf32>
    %187 = math.rsqrt %186 : vector<16x1xf32>
    %188 = vector.broadcast %187 : vector<16x1xf32> to vector<16x128xf32>
    %189 = arith.mulf %184, %188 : vector<16x128xf32>
    %190 = vector.broadcast %169 : vector<1x128xf32> to vector<16x128xf32>
    %191 = arith.mulf %189, %190 : vector<16x128xf32>
    %192 = vector.broadcast %171 : vector<1x128xf32> to vector<16x128xf32>
    %193 = arith.addf %191, %192 : vector<16x128xf32>
    %c0_76 = arith.constant 0 : index
    %c0_77 = arith.constant 0 : index
    %194 = vector.load %arg22[%c0_76, %c0_77] : memref<16x128xf32, #tpu.memory_space<vmem>>, vector<16x128xf32>
    tpu.vector_store %arg22[%c0_76, %c0_77], %193 {strides = array<i32>} : memref<16x128xf32, #tpu.memory_space<vmem>>, vector<16x128xf32>,
    %c1_i32 = arith.constant 1 : i32
    %195 = arith.cmpi eq, %arg0, %c1_i32 : i32
    %196 = arith.extui %195 : i1 to i32
    %c0_i32_78 = arith.constant 0 : i32
    %197 = arith.cmpi ne, %196, %c0_i32_78 : i32
    scf.if %197 {
      %198 = vector.extract_strided_slice %193 {offsets = [0, 0], sizes = [1, 128], strides = [1, 1]} : vector<16x128xf32> to vector<1x128xf32>
      %199 = vector.extract_strided_slice %193 {offsets = [8, 0], sizes = [1, 128], strides = [1, 1]} : vector<16x128xf32> to vector<1x128xf32>
      %200 = tpu.concatenate %198, %199 in 0 : vector<1x128xf32>, vector<1x128xf32> -> vector<2x128xf32>
      %201 = arith.truncf %200 : vector<2x128xf32> to vector<2x128xbf16>
      %c0_79 = arith.constant 0 : index
      %c0_80 = arith.constant 0 : index
      %202 = vector.load %arg17[%c0_79, %c0_80] : memref<128x128xbf16, #tpu.memory_space<vmem>>, vector<128x128xbf16>
      %cst_81 = arith.constant dense<0.000000e+00> : vector<2x128xf32>
      %203 = tpu.matmul %201, %202, %cst_81 {dimension_numbers = #tpu.dot_dimension_numbers<[1], [0], [0], [1], [0, 0, 1, 1], [], []>} : vector<2x128xbf16>, vector<128x128xbf16>, vector<2x128xf32> -> vector<2x128xf32>
      %c0_82 = arith.constant 0 : index
      %c0_83 = arith.constant 0 : index
      %204 = vector.load %arg18[%c0_82, %c0_83] : memref<1x128xf32, #tpu.memory_space<vmem>>, vector<1x128xf32>
      %205 = vector.broadcast %204 : vector<1x128xf32> to vector<2x128xf32>
      %206 = arith.addf %203, %205 : vector<2x128xf32>
      %207 = math.tanh %206 : vector<2x128xf32>
      %208 = arith.truncf %207 : vector<2x128xf32> to vector<2x128xbf16>
      %c0_84 = arith.constant 0 : index
      %c0_85 = arith.constant 0 : index
      %209 = vector.load %arg19[%c0_84, %c0_85] : memref<128x128xbf16, #tpu.memory_space<vmem>>, vector<128x128xbf16>
      %cst_86 = arith.constant dense<0.000000e+00> : vector<2x128xf32>
      %210 = tpu.matmul %208, %209, %cst_86 {dimension_numbers = #tpu.dot_dimension_numbers<[1], [0], [0], [1], [0, 0, 1, 1], [], []>} : vector<2x128xbf16>, vector<128x128xbf16>, vector<2x128xf32> -> vector<2x128xf32>
      %c0_87 = arith.constant 0 : index
      %c0_88 = arith.constant 0 : index
      %211 = vector.load %arg20[%c0_87, %c0_88] : memref<1x128xf32, #tpu.memory_space<vmem>>, vector<1x128xf32>
      %212 = vector.broadcast %211 : vector<1x128xf32> to vector<2x128xf32>
      %213 = arith.addf %210, %212 : vector<2x128xf32>
      %c0_89 = arith.constant 0 : index
      %c0_90 = arith.constant 0 : index
      %214 = vector.load %arg21[%c0_89, %c0_90] : memref<2x128xf32, #tpu.memory_space<vmem>>, vector<2x128xf32>
      tpu.vector_store %arg21[%c0_89, %c0_90], %213 {strides = array<i32>} : memref<2x128xf32, #tpu.memory_space<vmem>>, vector<2x128xf32>,
    } else {
    }
    return
  }
  func.func @transform_0(%arg0: i32) -> (i32, i32) {
    %c0_i32 = arith.constant 0 : i32
    %c0_i32_0 = arith.constant 0 : i32
    %c0_i32_1 = arith.constant 0 : i32
    return %c0_i32, %c0_i32_0 : i32, i32
  }
  func.func @transform_1(%arg0: i32) -> (i32, i32) {
    %c0_i32 = arith.constant 0 : i32
    %c0_i32_0 = arith.constant 0 : i32
    %c0_i32_1 = arith.constant 0 : i32
    return %c0_i32, %c0_i32_0 : i32, i32
  }
  func.func @transform_2(%arg0: i32) -> (i32, i32) {
    %c0_i32 = arith.constant 0 : i32
    %c0_i32_0 = arith.constant 0 : i32
    %c0_i32_1 = arith.constant 0 : i32
    return %c0_i32, %c0_i32_0 : i32, i32
  }
  func.func @transform_3(%arg0: i32) -> (i32, i32) {
    %c0_i32 = arith.constant 0 : i32
    %c0_i32_0 = arith.constant 0 : i32
    %c0_i32_1 = arith.constant 0 : i32
    return %c0_i32, %c0_i32_0 : i32, i32
  }
  func.func @transform_4(%arg0: i32) -> (i32, i32, i32) {
    %c0_i32 = arith.constant 0 : i32
    %c0_i32_0 = arith.constant 0 : i32
    %c0_i32_1 = arith.constant 0 : i32
    return %arg0, %c0_i32, %c0_i32_0 : i32, i32, i32
  }
  func.func @transform_5(%arg0: i32) -> (i32, i32, i32) {
    %c0_i32 = arith.constant 0 : i32
    %c0_i32_0 = arith.constant 0 : i32
    %c0_i32_1 = arith.constant 0 : i32
    return %arg0, %c0_i32, %c0_i32_0 : i32, i32, i32
  }
  func.func @transform_6(%arg0: i32) -> (i32, i32, i32) {
    %c0_i32 = arith.constant 0 : i32
    %c0_i32_0 = arith.constant 0 : i32
    %c0_i32_1 = arith.constant 0 : i32
    return %arg0, %c0_i32, %c0_i32_0 : i32, i32, i32
  }
  func.func @transform_7(%arg0: i32) -> (i32, i32, i32) {
    %c0_i32 = arith.constant 0 : i32
    %c0_i32_0 = arith.constant 0 : i32
    %c0_i32_1 = arith.constant 0 : i32
    return %arg0, %c0_i32, %c0_i32_0 : i32, i32, i32
  }
  func.func @transform_8(%arg0: i32) -> (i32, i32, i32) {
    %c0_i32 = arith.constant 0 : i32
    %c0_i32_0 = arith.constant 0 : i32
    %c0_i32_1 = arith.constant 0 : i32
    return %arg0, %c0_i32, %c0_i32_0 : i32, i32, i32
  }
  func.func @transform_9(%arg0: i32) -> (i32, i32, i32) {
    %c0_i32 = arith.constant 0 : i32
    %c0_i32_0 = arith.constant 0 : i32
    %c0_i32_1 = arith.constant 0 : i32
    return %arg0, %c0_i32, %c0_i32_0 : i32, i32, i32
  }
  func.func @transform_10(%arg0: i32) -> (i32, i32, i32) {
    %c0_i32 = arith.constant 0 : i32
    %c0_i32_0 = arith.constant 0 : i32
    %c0_i32_1 = arith.constant 0 : i32
    return %arg0, %c0_i32, %c0_i32_0 : i32, i32, i32
  }
  func.func @transform_11(%arg0: i32) -> (i32, i32, i32) {
    %c0_i32 = arith.constant 0 : i32
    %c0_i32_0 = arith.constant 0 : i32
    %c0_i32_1 = arith.constant 0 : i32
    return %arg0, %c0_i32, %c0_i32_0 : i32, i32, i32
  }
  func.func @transform_12(%arg0: i32) -> (i32, i32, i32) {
    %c0_i32 = arith.constant 0 : i32
    %c0_i32_0 = arith.constant 0 : i32
    %c0_i32_1 = arith.constant 0 : i32
    return %arg0, %c0_i32, %c0_i32_0 : i32, i32, i32
  }
  func.func @transform_13(%arg0: i32) -> (i32, i32, i32) {
    %c0_i32 = arith.constant 0 : i32
    %c0_i32_0 = arith.constant 0 : i32
    %c0_i32_1 = arith.constant 0 : i32
    return %arg0, %c0_i32, %c0_i32_0 : i32, i32, i32
  }
  func.func @transform_14(%arg0: i32) -> (i32, i32, i32) {
    %c0_i32 = arith.constant 0 : i32
    %c0_i32_0 = arith.constant 0 : i32
    %c0_i32_1 = arith.constant 0 : i32
    return %arg0, %c0_i32, %c0_i32_0 : i32, i32, i32
  }
  func.func @transform_15(%arg0: i32) -> (i32, i32, i32) {
    %c0_i32 = arith.constant 0 : i32
    %c0_i32_0 = arith.constant 0 : i32
    %c0_i32_1 = arith.constant 0 : i32
    return %arg0, %c0_i32, %c0_i32_0 : i32, i32, i32
  }
  func.func @transform_16(%arg0: i32) -> (i32, i32) {
    %c0_i32 = arith.constant 0 : i32
    %c0_i32_0 = arith.constant 0 : i32
    %c0_i32_1 = arith.constant 0 : i32
    return %c0_i32, %c0_i32_0 : i32, i32
  }
  func.func @transform_17(%arg0: i32) -> (i32, i32) {
    %c0_i32 = arith.constant 0 : i32
    %c0_i32_0 = arith.constant 0 : i32
    %c0_i32_1 = arith.constant 0 : i32
    return %c0_i32, %c0_i32_0 : i32, i32
  }
  func.func @transform_18(%arg0: i32) -> (i32, i32) {
    %c0_i32 = arith.constant 0 : i32
    %c0_i32_0 = arith.constant 0 : i32
    %c0_i32_1 = arith.constant 0 : i32
    return %c0_i32, %c0_i32_0 : i32, i32
  }
  func.func @transform_19(%arg0: i32) -> (i32, i32) {
    %c0_i32 = arith.constant 0 : i32
    %c0_i32_0 = arith.constant 0 : i32
    %c0_i32_1 = arith.constant 0 : i32
    return %c0_i32, %c0_i32_0 : i32, i32
  }
  func.func @transform_20(%arg0: i32) -> (i32, i32) {
    %c0_i32 = arith.constant 0 : i32
    %c0_i32_0 = arith.constant 0 : i32
    %c0_i32_1 = arith.constant 0 : i32
    return %c0_i32, %c0_i32_0 : i32, i32
  }
}

</mosaic_0001>

<llo_original>
// kernel: text_classification_forward.1
$region0: #{text_classification_forward.1}
  #allocation0 [shape = 'u32[]', space=smem, size = 0x4, offset = 0x4, fixed_abs, tag = 'smem constant byte address 0x4 - core index']
  #allocation1 [shape = 'u32[144,128]{1,0:T(1,128)}', space=vmem, size = 0x12000, scoped, tag = 'internal scratch']
  #allocation2 [shape = 'f32[16,128]{1,0:T(8,128)}', space=vmem, size = 0x2000, scoped, tag = 'scratch operand']
  %s0 = inlined_call_operand.vmem [shape: bf16[16,128], index: 0, kind: input, shape index: {}]
  %s1 = inlined_call_operand.vmem [shape: f32[2,8], index: 1, kind: input, shape index: {}]
  %s2 = inlined_call_operand.vmem [shape: f32[1,128], index: 2, kind: input, shape index: {}]
  %s3 = inlined_call_operand.vmem [shape: f32[1,128], index: 3, kind: input, shape index: {}]
  %s4 = inlined_call_operand.vmem [shape: bf16[2,128,384], index: 4, kind: input, shape index: {}]
  %s5 = inlined_call_operand.vmem [shape: f32[2,1,384], index: 5, kind: input, shape index: {}]
  %s6 = inlined_call_operand.vmem [shape: bf16[2,128,128], index: 6, kind: input, shape index: {}]
  %s7 = inlined_call_operand.vmem [shape: f32[2,1,128], index: 7, kind: input, shape index: {}]
  %s8 = inlined_call_operand.vmem [shape: f32[2,1,128], index: 8, kind: input, shape index: {}]
  %s9 = inlined_call_operand.vmem [shape: f32[2,1,128], index: 9, kind: input, shape index: {}]
  %s10 = inlined_call_operand.vmem [shape: bf16[2,128,256], index: 10, kind: input, shape index: {}]
  %s11 = inlined_call_operand.vmem [shape: f32[2,1,256], index: 11, kind: input, shape index: {}]
  %s12 = inlined_call_operand.vmem [shape: bf16[2,256,128], index: 12, kind: input, shape index: {}]
  %s13 = inlined_call_operand.vmem [shape: f32[2,1,128], index: 13, kind: input, shape index: {}]
  %s14 = inlined_call_operand.vmem [shape: f32[2,1,128], index: 14, kind: input, shape index: {}]
  %s15 = inlined_call_operand.vmem [shape: f32[2,1,128], index: 15, kind: input, shape index: {}]
  %s16 = inlined_call_operand.vmem [shape: bf16[128,128], index: 16, kind: input, shape index: {}]
  %s17 = inlined_call_operand.vmem [shape: f32[1,128], index: 17, kind: input, shape index: {}]
  %s18 = inlined_call_operand.vmem [shape: bf16[128,128], index: 18, kind: input, shape index: {}]
  %s19 = inlined_call_operand.vmem [shape: f32[1,128], index: 19, kind: input, shape index: {}]
  %s20 = inlined_call_operand.vmem [shape: f32[2,128], index: 20, kind: output, shape index: {}]
  %s21 = sld [smem:[#allocation0]]
  $region121: #{text_classification_forward.1} parent=0
    _
  %s23 = ssub.s32 1, %s21
  %s24 = scalar_select 0, %s23, %s21
  loop: start=0, step=1, limit=4
  $region2: #{text_classification_forward.1} parent=0 // loop_pre_header
    _
  $region3: #{text_classification_forward.1} parent=0 // loop_header
    %s26 = sphi 0, %s30
    %p27 = scmp.ge.s32.totalorder %s26, 4
    %s34 = sphi 0, %s34
    %s36 = sphi 0, %s34
    %s37 = sphi 0, %s36
    %s51 = sphi 0, %s37
    %s55 = sphi 0, %s55
    %s57 = sphi 0, %s55
    %s58 = sphi 0, %s57
    %s72 = sphi 0, %s58
    %s76 = sphi 0, %s76
    %s78 = sphi 0, %s76
    %s79 = sphi 0, %s78
    %s93 = sphi 0, %s79
    %s97 = sphi 0, %s97
    %s99 = sphi 0, %s97
    %s100 = sphi 0, %s99
    %s114 = sphi 0, %s100
    %s120 = sphi 0, %s122
    %s123 = sphi 0, %s120
    %s124 = sphi 0, %s123
    %s140 = sphi 0, %s124
    %s146 = sphi 0, %s148
    %s149 = sphi 0, %s146
    %s150 = sphi 0, %s149
    %s166 = sphi 0, %s150
    %s172 = sphi 0, %s174
    %s175 = sphi 0, %s172
    %s176 = sphi 0, %s175
    %s192 = sphi 0, %s176
    %s198 = sphi 0, %s200
    %s201 = sphi 0, %s198
    %s202 = sphi 0, %s201
    %s218 = sphi 0, %s202
    %s224 = sphi 0, %s226
    %s227 = sphi 0, %s224
    %s228 = sphi 0, %s227
    %s244 = sphi 0, %s228
    %s250 = sphi 0, %s252
    %s253 = sphi 0, %s250
    %s254 = sphi 0, %s253
    %s270 = sphi 0, %s254
    %s276 = sphi 0, %s278
    %s279 = sphi 0, %s276
    %s280 = sphi 0, %s279
    %s296 = sphi 0, %s280
    %s302 = sphi 0, %s304
    %s305 = sphi 0, %s302
    %s306 = sphi 0, %s305
    %s322 = sphi 0, %s306
    %s328 = sphi 0, %s330
    %s331 = sphi 0, %s328
    %s332 = sphi 0, %s331
    %s348 = sphi 0, %s332
    %s354 = sphi 0, %s356
    %s357 = sphi 0, %s354
    %s358 = sphi 0, %s357
    %s374 = sphi 0, %s358
    %s380 = sphi 0, %s382
    %s383 = sphi 0, %s380
    %s384 = sphi 0, %s383
    %s400 = sphi 0, %s384
    %s406 = sphi 0, %s408
    %s409 = sphi 0, %s406
    %s410 = sphi 0, %s409
    %s426 = sphi 0, %s410
    %s430 = sphi 0, %s430
    %s432 = sphi 0, %s430
    %s433 = sphi 0, %s432
    %s447 = sphi 0, %s433
    %s451 = sphi 0, %s451
    %s453 = sphi 0, %s451
    %s454 = sphi 0, %s453
    %s468 = sphi 0, %s454
    %s472 = sphi 0, %s472
    %s474 = sphi 0, %s472
    %s475 = sphi 0, %s474
    %s489 = sphi 0, %s475
    %s493 = sphi 0, %s493
    %s495 = sphi 0, %s493
    %s496 = sphi 0, %s495
    %s510 = sphi 0, %s496
    %s514 = sphi 0, %s514
    %s516 = sphi 0, %s514
    %s517 = sphi 0, %s516
    %s531 = sphi 0, %s517
  $region4: #{text_classification_forward.1} parent=0 // loop_header_branch
    %29 = sbr.rel (%p27) target = $region8
  $region5: #{text_classification_forward.1} parent=0 // loop_body
    %s31 = ssub.s32 %s26, 1
    %s32 = ssub.s32 %s26, 2
    %s33 = sadd.s32 %s26, 1
    %s35 = sadd.s32 %s34, 1
    %p38 = scmp.eq.s32.totalorder %s26, 1
    %p39 = scmp.ne.s32.totalorder %s34, %s36
    %p40 = scmp.eq.s32.totalorder %s26, 0
    %p41 = por %p39, %p40
    %p42 = scmp.ne.s32.totalorder %s34, %s36
    %p43 = scmp.eq.s32.totalorder %s31, 1
    %p44 = por %p42, %p43
    %p45 = scmp.ne.s32.totalorder %s36, %s37
    %p46 = scmp.eq.s32.totalorder %s31, 0
    %p47 = por %p45, %p46
    %p48 = scmp.ne.s32.totalorder %s36, %s37
    %p49 = scmp.eq.s32.totalorder %s32, 1
    %p50 = por %p48, %p49
    %p52 = scmp.ne.s32.totalorder %s37, %s51
    %p53 = scmp.eq.s32.totalorder %s32, 0
    %p54 = por %p52, %p53
    %s56 = sadd.s32 %s55, 1
    %p59 = scmp.eq.s32.totalorder %s26, 1
    %p60 = scmp.ne.s32.totalorder %s55, %s57
    %p61 = scmp.eq.s32.totalorder %s26, 0
    %p62 = por %p60, %p61
    %p63 = scmp.ne.s32.totalorder %s55, %s57
    %p64 = scmp.eq.s32.totalorder %s31, 1
    %p65 = por %p63, %p64
    %p66 = scmp.ne.s32.totalorder %s57, %s58
    %p67 = scmp.eq.s32.totalorder %s31, 0
    %p68 = por %p66, %p67
    %p69 = scmp.ne.s32.totalorder %s57, %s58
    %p70 = scmp.eq.s32.totalorder %s32, 1
    %p71 = por %p69, %p70
    %p73 = scmp.ne.s32.totalorder %s58, %s72
    %p74 = scmp.eq.s32.totalorder %s32, 0
    %p75 = por %p73, %p74
    %s77 = sadd.s32 %s76, 1
    %p80 = scmp.eq.s32.totalorder %s26, 1
    %p81 = scmp.ne.s32.totalorder %s76, %s78
    %p82 = scmp.eq.s32.totalorder %s26, 0
    %p83 = por %p81, %p82
    %p84 = scmp.ne.s32.totalorder %s76, %s78
    %p85 = scmp.eq.s32.totalorder %s31, 1
    %p86 = por %p84, %p85
    %p87 = scmp.ne.s32.totalorder %s78, %s79
    %p88 = scmp.eq.s32.totalorder %s31, 0
    %p89 = por %p87, %p88
    %p90 = scmp.ne.s32.totalorder %s78, %s79
    %p91 = scmp.eq.s32.totalorder %s32, 1
    %p92 = por %p90, %p91
    %p94 = scmp.ne.s32.totalorder %s79, %s93
    %p95 = scmp.eq.s32.totalorder %s32, 0
    %p96 = por %p94, %p95
    %s98 = sadd.s32 %s97, 1
    %p101 = scmp.eq.s32.totalorder %s26, 1
    %p102 = scmp.ne.s32.totalorder %s97, %s99
    %p103 = scmp.eq.s32.totalorder %s26, 0
    %p104 = por %p102, %p103
    %p105 = scmp.ne.s32.totalorder %s97, %s99
    %p106 = scmp.eq.s32.totalorder %s31, 1
    %p107 = por %p105, %p106
    %p108 = scmp.ne.s32.totalorder %s99, %s100
    %p109 = scmp.eq.s32.totalorder %s31, 0
    %p110 = por %p108, %p109
    %p111 = scmp.ne.s32.totalorder %s99, %s100
    %p112 = scmp.eq.s32.totalorder %s32, 1
    %p113 = por %p111, %p112
    %p115 = scmp.ne.s32.totalorder %s100, %s114
    %p116 = scmp.eq.s32.totalorder %s32, 0
    %p117 = por %p115, %p116
    %s118 = ssub.s32 %s26, %s33
    %p119 = scmp.eq.s32.totalorder %s118, 0
    %s121 = sadd.s32 %s120, 1
    %s122 = scalar_select %p119, %s120, %s121
    %p125 = pneg %p119
    %p126 = scmp.eq.s32.totalorder %s26, 1
    %p127 = por %p125, %p126
    %p128 = scmp.ne.s32.totalorder %s120, %s123
    %p129 = scmp.eq.s32.totalorder %s26, 0
    %p130 = por %p128, %p129
    %p131 = scmp.ne.s32.totalorder %s120, %s123
    %p132 = scmp.eq.s32.totalorder %s31, 1
    %p133 = por %p131, %p132
    %p134 = scmp.ne.s32.totalorder %s123, %s124
    %p135 = scmp.eq.s32.totalorder %s31, 0
    %p136 = por %p134, %p135
    %p137 = scmp.ne.s32.totalorder %s123, %s124
    %p138 = scmp.eq.s32.totalorder %s32, 1
    %p139 = por %p137, %p138
    %p141 = scmp.ne.s32.totalorder %s124, %s140
    %p142 = scmp.eq.s32.totalorder %s32, 0
    %p143 = por %p141, %p142
    %s144 = ssub.s32 %s26, %s33
    %p145 = scmp.eq.s32.totalorder %s144, 0
    %s147 = sadd.s32 %s146, 1
    %s148 = scalar_select %p145, %s146, %s147
    %p151 = pneg %p145
    %p152 = scmp.eq.s32.totalorder %s26, 1
    %p153 = por %p151, %p152
    %p154 = scmp.ne.s32.totalorder %s146, %s149
    %p155 = scmp.eq.s32.totalorder %s26, 0
    %p156 = por %p154, %p155
    %p157 = scmp.ne.s32.totalorder %s146, %s149
    %p158 = scmp.eq.s32.totalorder %s31, 1
    %p159 = por %p157, %p158
    %p160 = scmp.ne.s32.totalorder %s149, %s150
    %p161 = scmp.eq.s32.totalorder %s31, 0
    %p162 = por %p160, %p161
    %p163 = scmp.ne.s32.totalorder %s149, %s150
    %p164 = scmp.eq.s32.totalorder %s32, 1
    %p165 = por %p163, %p164
    %p167 = scmp.ne.s32.totalorder %s150, %s166
    %p168 = scmp.eq.s32.totalorder %s32, 0
    %p169 = por %p167, %p168
    %s170 = ssub.s32 %s26, %s33
    %p171 = scmp.eq.s32.totalorder %s170, 0
    %s173 = sadd.s32 %s172, 1
    %s174 = scalar_select %p171, %s172, %s173
    %p177 = pneg %p171
    %p178 = scmp.eq.s32.totalorder %s26, 1
    %p179 = por %p177, %p178
    %p180 = scmp.ne.s32.totalorder %s172, %s175
    %p181 = scmp.eq.s32.totalorder %s26, 0
    %p182 = por %p180, %p181
    %p183 = scmp.ne.s32.totalorder %s172, %s175
    %p184 = scmp.eq.s32.totalorder %s31, 1
    %p185 = por %p183, %p184
    %p186 = scmp.ne.s32.totalorder %s175, %s176
    %p187 = scmp.eq.s32.totalorder %s31, 0
    %p188 = por %p186, %p187
    %p189 = scmp.ne.s32.totalorder %s175, %s176
    %p190 = scmp.eq.s32.totalorder %s32, 1
    %p191 = por %p189, %p190
    %p193 = scmp.ne.s32.totalorder %s176, %s192
    %p194 = scmp.eq.s32.totalorder %s32, 0
    %p195 = por %p193, %p194
    %s196 = ssub.s32 %s26, %s33
    %p197 = scmp.eq.s32.totalorder %s196, 0
    %s199 = sadd.s32 %s198, 1
    %s200 = scalar_select %p197, %s198, %s199
    %p203 = pneg %p197
    %p204 = scmp.eq.s32.totalorder %s26, 1
    %p205 = por %p203, %p204
    %p206 = scmp.ne.s32.totalorder %s198, %s201
    %p207 = scmp.eq.s32.totalorder %s26, 0
    %p208 = por %p206, %p207
    %p209 = scmp.ne.s32.totalorder %s198, %s201
    %p210 = scmp.eq.s32.totalorder %s31, 1
    %p211 = por %p209, %p210
    %p212 = scmp.ne.s32.totalorder %s201, %s202
    %p213 = scmp.eq.s32.totalorder %s31, 0
    %p214 = por %p212, %p213
    %p215 = scmp.ne.s32.totalorder %s201, %s202
    %p216 = scmp.eq.s32.totalorder %s32, 1
    %p217 = por %p215, %p216
    %p219 = scmp.ne.s32.totalorder %s202, %s218
    %p220 = scmp.eq.s32.totalorder %s32, 0
    %p221 = por %p219, %p220
    %s222 = ssub.s32 %s26, %s33
    %p223 = scmp.eq.s32.totalorder %s222, 0
    %s225 = sadd.s32 %s224, 1
    %s226 = scalar_select %p223, %s224, %s225
    %p229 = pneg %p223
    %p230 = scmp.eq.s32.totalorder %s26, 1
    %p231 = por %p229, %p230
    %p232 = scmp.ne.s32.totalorder %s224, %s227
    %p233 = scmp.eq.s32.totalorder %s26, 0
    %p234 = por %p232, %p233
    %p235 = scmp.ne.s32.totalorder %s224, %s227
    %p236 = scmp.eq.s32.totalorder %s31, 1
    %p237 = por %p235, %p236
    %p238 = scmp.ne.s32.totalorder %s227, %s228
    %p239 = scmp.eq.s32.totalorder %s31, 0
    %p240 = por %p238, %p239
    %p241 = scmp.ne.s32.totalorder %s227, %s228
    %p242 = scmp.eq.s32.totalorder %s32, 1
    %p243 = por %p241, %p242
    %p245 = scmp.ne.s32.totalorder %s228, %s244
    %p246 = scmp.eq.s32.totalorder %s32, 0
    %p247 = por %p245, %p246
    %s248 = ssub.s32 %s26, %s33
    %p249 = scmp.eq.s32.totalorder %s248, 0
    %s251 = sadd.s32 %s250, 1
    %s252 = scalar_select %p249, %s250, %s251
    %p255 = pneg %p249
    %p256 = scmp.eq.s32.totalorder %s26, 1
    %p257 = por %p255, %p256
    %p258 = scmp.ne.s32.totalorder %s250, %s253
    %p259 = scmp.eq.s32.totalorder %s26, 0
    %p260 = por %p258, %p259
    %p261 = scmp.ne.s32.totalorder %s250, %s253
    %p262 = scmp.eq.s32.totalorder %s31, 1
    %p263 = por %p261, %p262
    %p264 = scmp.ne.s32.totalorder %s253, %s254
    %p265 = scmp.eq.s32.totalorder %s31, 0
    %p266 = por %p264, %p265
    %p267 = scmp.ne.s32.totalorder %s253, %s254
    %p268 = scmp.eq.s32.totalorder %s32, 1
    %p269 = por %p267, %p268
    %p271 = scmp.ne.s32.totalorder %s254, %s270
    %p272 = scmp.eq.s32.totalorder %s32, 0
    %p273 = por %p271, %p272
    %s274 = ssub.s32 %s26, %s33
    %p275 = scmp.eq.s32.totalorder %s274, 0
    %s277 = sadd.s32 %s276, 1
    %s278 = scalar_select %p275, %s276, %s277
    %p281 = pneg %p275
    %p282 = scmp.eq.s32.totalorder %s26, 1
    %p283 = por %p281, %p282
    %p284 = scmp.ne.s32.totalorder %s276, %s279
    %p285 = scmp.eq.s32.totalorder %s26, 0
    %p286 = por %p284, %p285
    %p287 = scmp.ne.s32.totalorder %s276, %s279
    %p288 = scmp.eq.s32.totalorder %s31, 1
    %p289 = por %p287, %p288
    %p290 = scmp.ne.s32.totalorder %s279, %s280
    %p291 = scmp.eq.s32.totalorder %s31, 0
    %p292 = por %p290, %p291
    %p293 = scmp.ne.s32.totalorder %s279, %s280
    %p294 = scmp.eq.s32.totalorder %s32, 1
    %p295 = por %p293, %p294
    %p297 = scmp.ne.s32.totalorder %s280, %s296
    %p298 = scmp.eq.s32.totalorder %s32, 0
    %p299 = por %p297, %p298
    %s300 = ssub.s32 %s26, %s33
    %p301 = scmp.eq.s32.totalorder %s300, 0
    %s303 = sadd.s32 %s302, 1
    %s304 = scalar_select %p301, %s302, %s303
    %p307 = pneg %p301
    %p308 = scmp.eq.s32.totalorder %s26, 1
    %p309 = por %p307, %p308
    %p310 = scmp.ne.s32.totalorder %s302, %s305
    %p311 = scmp.eq.s32.totalorder %s26, 0
    %p312 = por %p310, %p311
    %p313 = scmp.ne.s32.totalorder %s302, %s305
    %p314 = scmp.eq.s32.totalorder %s31, 1
    %p315 = por %p313, %p314
    %p316 = scmp.ne.s32.totalorder %s305, %s306
    %p317 = scmp.eq.s32.totalorder %s31, 0
    %p318 = por %p316, %p317
    %p319 = scmp.ne.s32.totalorder %s305, %s306
    %p320 = scmp.eq.s32.totalorder %s32, 1
    %p321 = por %p319, %p320
    %p323 = scmp.ne.s32.totalorder %s306, %s322
    %p324 = scmp.eq.s32.totalorder %s32, 0
    %p325 = por %p323, %p324
    %s326 = ssub.s32 %s26, %s33
    %p327 = scmp.eq.s32.totalorder %s326, 0
    %s329 = sadd.s32 %s328, 1
    %s330 = scalar_select %p327, %s328, %s329
    %p333 = pneg %p327
    %p334 = scmp.eq.s32.totalorder %s26, 1
    %p335 = por %p333, %p334
    %p336 = scmp.ne.s32.totalorder %s328, %s331
    %p337 = scmp.eq.s32.totalorder %s26, 0
    %p338 = por %p336, %p337
    %p339 = scmp.ne.s32.totalorder %s328, %s331
    %p340 = scmp.eq.s32.totalorder %s31, 1
    %p341 = por %p339, %p340
    %p342 = scmp.ne.s32.totalorder %s331, %s332
    %p343 = scmp.eq.s32.totalorder %s31, 0
    %p344 = por %p342, %p343
    %p345 = scmp.ne.s32.totalorder %s331, %s332
    %p346 = scmp.eq.s32.totalorder %s32, 1
    %p347 = por %p345, %p346
    %p349 = scmp.ne.s32.totalorder %s332, %s348
    %p350 = scmp.eq.s32.totalorder %s32, 0
    %p351 = por %p349, %p350
    %s352 = ssub.s32 %s26, %s33
    %p353 = scmp.eq.s32.totalorder %s352, 0
    %s355 = sadd.s32 %s354, 1
    %s356 = scalar_select %p353, %s354, %s355
    %p359 = pneg %p353
    %p360 = scmp.eq.s32.totalorder %s26, 1
    %p361 = por %p359, %p360
    %p362 = scmp.ne.s32.totalorder %s354, %s357
    %p363 = scmp.eq.s32.totalorder %s26, 0
    %p364 = por %p362, %p363
    %p365 = scmp.ne.s32.totalorder %s354, %s357
    %p366 = scmp.eq.s32.totalorder %s31, 1
    %p367 = por %p365, %p366
    %p368 = scmp.ne.s32.totalorder %s357, %s358
    %p369 = scmp.eq.s32.totalorder %s31, 0
    %p370 = por %p368, %p369
    %p371 = scmp.ne.s32.totalorder %s357, %s358
    %p372 = scmp.eq.s32.totalorder %s32, 1
    %p373 = por %p371, %p372
    %p375 = scmp.ne.s32.totalorder %s358, %s374
    %p376 = scmp.eq.s32.totalorder %s32, 0
    %p377 = por %p375, %p376
    %s378 = ssub.s32 %s26, %s33
    %p379 = scmp.eq.s32.totalorder %s378, 0
    %s381 = sadd.s32 %s380, 1
    %s382 = scalar_select %p379, %s380, %s381
    %p385 = pneg %p379
    %p386 = scmp.eq.s32.totalorder %s26, 1
    %p387 = por %p385, %p386
    %p388 = scmp.ne.s32.totalorder %s380, %s383
    %p389 = scmp.eq.s32.totalorder %s26, 0
    %p390 = por %p388, %p389
    %p391 = scmp.ne.s32.totalorder %s380, %s383
    %p392 = scmp.eq.s32.totalorder %s31, 1
    %p393 = por %p391, %p392
    %p394 = scmp.ne.s32.totalorder %s383, %s384
    %p395 = scmp.eq.s32.totalorder %s31, 0
    %p396 = por %p394, %p395
    %p397 = scmp.ne.s32.totalorder %s383, %s384
    %p398 = scmp.eq.s32.totalorder %s32, 1
    %p399 = por %p397, %p398
    %p401 = scmp.ne.s32.totalorder %s384, %s400
    %p402 = scmp.eq.s32.totalorder %s32, 0
    %p403 = por %p401, %p402
    %s404 = ssub.s32 %s26, %s33
    %p405 = scmp.eq.s32.totalorder %s404, 0
    %s407 = sadd.s32 %s406, 1
    %s408 = scalar_select %p405, %s406, %s407
    %p411 = pneg %p405
    %p412 = scmp.eq.s32.totalorder %s26, 1
    %p413 = por %p411, %p412
    %p414 = scmp.ne.s32.totalorder %s406, %s409
    %p415 = scmp.eq.s32.totalorder %s26, 0
    %p416 = por %p414, %p415
    %p417 = scmp.ne.s32.totalorder %s406, %s409
    %p418 = scmp.eq.s32.totalorder %s31, 1
    %p419 = por %p417, %p418
    %p420 = scmp.ne.s32.totalorder %s409, %s410
    %p421 = scmp.eq.s32.totalorder %s31, 0
    %p422 = por %p420, %p421
    %p423 = scmp.ne.s32.totalorder %s409, %s410
    %p424 = scmp.eq.s32.totalorder %s32, 1
    %p425 = por %p423, %p424
    %p427 = scmp.ne.s32.totalorder %s410, %s426
    %p428 = scmp.eq.s32.totalorder %s32, 0
    %p429 = por %p427, %p428
    %s431 = sadd.s32 %s430, 1
    %p434 = scmp.eq.s32.totalorder %s26, 1
    %p435 = scmp.ne.s32.totalorder %s430, %s432
    %p436 = scmp.eq.s32.totalorder %s26, 0
    %p437 = por %p435, %p436
    %p438 = scmp.ne.s32.totalorder %s430, %s432
    %p439 = scmp.eq.s32.totalorder %s31, 1
    %p440 = por %p438, %p439
    %p441 = scmp.ne.s32.totalorder %s432, %s433
    %p442 = scmp.eq.s32.totalorder %s31, 0
    %p443 = por %p441, %p442
    %p444 = scmp.ne.s32.totalorder %s432, %s433
    %p445 = scmp.eq.s32.totalorder %s32, 1
    %p446 = por %p444, %p445
    %p448 = scmp.ne.s32.totalorder %s433, %s447
    %p449 = scmp.eq.s32.totalorder %s32, 0
    %p450 = por %p448, %p449
    %s452 = sadd.s32 %s451, 1
    %p455 = scmp.eq.s32.totalorder %s26, 1
    %p456 = scmp.ne.s32.totalorder %s451, %s453
    %p457 = scmp.eq.s32.totalorder %s26, 0
    %p458 = por %p456, %p457
    %p459 = scmp.ne.s32.totalorder %s451, %s453
    %p460 = scmp.eq.s32.totalorder %s31, 1
    %p461 = por %p459, %p460
    %p462 = scmp.ne.s32.totalorder %s453, %s454
    %p463 = scmp.eq.s32.totalorder %s31, 0
    %p464 = por %p462, %p463
    %p465 = scmp.ne.s32.totalorder %s453, %s454
    %p466 = scmp.eq.s32.totalorder %s32, 1
    %p467 = por %p465, %p466
    %p469 = scmp.ne.s32.totalorder %s454, %s468
    %p470 = scmp.eq.s32.totalorder %s32, 0
    %p471 = por %p469, %p470
    %s473 = sadd.s32 %s472, 1
    %p476 = scmp.eq.s32.totalorder %s26, 1
    %p477 = scmp.ne.s32.totalorder %s472, %s474
    %p478 = scmp.eq.s32.totalorder %s26, 0
    %p479 = por %p477, %p478
    %p480 = scmp.ne.s32.totalorder %s472, %s474
    %p481 = scmp.eq.s32.totalorder %s31, 1
    %p482 = por %p480, %p481
    %p483 = scmp.ne.s32.totalorder %s474, %s475
    %p484 = scmp.eq.s32.totalorder %s31, 0
    %p485 = por %p483, %p484
    %p486 = scmp.ne.s32.totalorder %s474, %s475
    %p487 = scmp.eq.s32.totalorder %s32, 1
    %p488 = por %p486, %p487
    %p490 = scmp.ne.s32.totalorder %s475, %s489
    %p491 = scmp.eq.s32.totalorder %s32, 0
    %p492 = por %p490, %p491
    %s494 = sadd.s32 %s493, 1
    %p497 = scmp.eq.s32.totalorder %s26, 1
    %p498 = scmp.ne.s32.totalorder %s493, %s495
    %p499 = scmp.eq.s32.totalorder %s26, 0
    %p500 = por %p498, %p499
    %p501 = scmp.ne.s32.totalorder %s493, %s495
    %p502 = scmp.eq.s32.totalorder %s31, 1
    %p503 = por %p501, %p502
    %p504 = scmp.ne.s32.totalorder %s495, %s496
    %p505 = scmp.eq.s32.totalorder %s31, 0
    %p506 = por %p504, %p505
    %p507 = scmp.ne.s32.totalorder %s495, %s496
    %p508 = scmp.eq.s32.totalorder %s32, 1
    %p509 = por %p507, %p508
    %p511 = scmp.ne.s32.totalorder %s496, %s510
    %p512 = scmp.eq.s32.totalorder %s32, 0
    %p513 = por %p511, %p512
    %s515 = sadd.s32 %s514, 1
    %p518 = scmp.eq.s32.totalorder %s26, 1
    %p519 = scmp.ne.s32.totalorder %s514, %s516
    %p520 = scmp.eq.s32.totalorder %s26, 0
    %p521 = por %p519, %p520
    %p522 = scmp.ne.s32.totalorder %s514, %s516
    %p523 = scmp.eq.s32.totalorder %s31, 1
    %p524 = por %p522, %p523
    %p525 = scmp.ne.s32.totalorder %s516, %s517
    %p526 = scmp.eq.s32.totalorder %s31, 0
    %p527 = por %p525, %p526
    %p528 = scmp.ne.s32.totalorder %s516, %s517
    %p529 = scmp.eq.s32.totalorder %s32, 1
    %p530 = por %p528, %p529
    %p532 = scmp.ne.s32.totalorder %s517, %s531
    %p533 = scmp.eq.s32.totalorder %s32, 0
    %p534 = por %p532, %p533
    %p535 = scmp.le.s32.totalorder 1, %s26
    %p536 = scmp.lt.s32.totalorder %s26, 3
    %p537 = pnand %p535, %p536
    %p538 = pneg %p537
    // Predicated region
    $region9: #{text_classification_forward.1} parent=5 // pred_check
      _
    $region10: #{text_classification_forward.1} parent=5 // pred_check_branch
      %540 = sbr.rel (%p537) target = $region12
    $region11: #{text_classification_forward.1} parent=5 // pred_region
      %s541 = ssub.s32 %s26, 1
      // Predicated region
      $region13: #{text_classification_forward.1} parent=11 // pred_check
        %p542 = pneg %p47
      $region14: #{text_classification_forward.1} parent=11 // pred_check_branch
        %544 = sbr.rel (%p542) target = $region16
      $region15: #{text_classification_forward.1} parent=11 // pred_region
        _
      $region16: #{text_classification_forward.1} parent=11 // pred_fallthru
        _
      // Predicated region
      $region17: #{text_classification_forward.1} parent=11 // pred_check
        %p545 = pneg %p68
      $region18: #{text_classification_forward.1} parent=11 // pred_check_branch
        %547 = sbr.rel (%p545) target = $region20
      $region19: #{text_classification_forward.1} parent=11 // pred_region
        _
      $region20: #{text_classification_forward.1} parent=11 // pred_fallthru
        _
      // Predicated region
      $region21: #{text_classification_forward.1} parent=11 // pred_check
        %p548 = pneg %p89
      $region22: #{text_classification_forward.1} parent=11 // pred_check_branch
        %550 = sbr.rel (%p548) target = $region24
      $region23: #{text_classification_forward.1} parent=11 // pred_region
        _
      $region24: #{text_classification_forward.1} parent=11 // pred_fallthru
        _
      // Predicated region
      $region25: #{text_classification_forward.1} parent=11 // pred_check
        %p551 = pneg %p110
      $region26: #{text_classification_forward.1} parent=11 // pred_check_branch
        %553 = sbr.rel (%p551) target = $region28
      $region27: #{text_classification_forward.1} parent=11 // pred_region
        _
      $region28: #{text_classification_forward.1} parent=11 // pred_fallthru
        _
      // Predicated region
      $region29: #{text_classification_forward.1} parent=11 // pred_check
        %p554 = pneg %p443
      $region30: #{text_classification_forward.1} parent=11 // pred_check_branch
        %556 = sbr.rel (%p554) target = $region32
      $region31: #{text_classification_forward.1} parent=11 // pred_region
        _
      $region32: #{text_classification_forward.1} parent=11 // pred_fallthru
        _
      // Predicated region
      $region33: #{text_classification_forward.1} parent=11 // pred_check
        %p557 = pneg %p464
      $region34: #{text_classification_forward.1} parent=11 // pred_check_branch
        %559 = sbr.rel (%p557) target = $region36
      $region35: #{text_classification_forward.1} parent=11 // pred_region
        _
      $region36: #{text_classification_forward.1} parent=11 // pred_fallthru
        _
      // Predicated region
      $region37: #{text_classification_forward.1} parent=11 // pred_check
        %p560 = pneg %p485
      $region38: #{text_classification_forward.1} parent=11 // pred_check_branch
        %562 = sbr.rel (%p560) target = $region40
      $region39: #{text_classification_forward.1} parent=11 // pred_region
        _
      $region40: #{text_classification_forward.1} parent=11 // pred_fallthru
        _
      // Predicated region
      $region41: #{text_classification_forward.1} parent=11 // pred_check
        %p563 = pneg %p506
      $region42: #{text_classification_forward.1} parent=11 // pred_check_branch
        %565 = sbr.rel (%p563) target = $region44
      $region43: #{text_classification_forward.1} parent=11 // pred_region
        _
      $region44: #{text_classification_forward.1} parent=11 // pred_fallthru
        _
    $region12: #{text_classification_forward.1} parent=5 // pred_fallthru
      _
    %p566 = scmp.lt.s32.totalorder %s26, 2
    // Predicated region
    $region45: #{text_classification_forward.1} parent=5 // pred_check
      %p567 = pneg %p566
    $region46: #{text_classification_forward.1} parent=5 // pred_check_branch
      %569 = sbr.rel (%p567) target = $region48
    $region47: #{text_classification_forward.1} parent=5 // pred_region
      // Predicated region
      $region49: #{text_classification_forward.1} parent=47 // pred_check
        %p570 = pneg %p130
      $region50: #{text_classification_forward.1} parent=47 // pred_check_branch
        %572 = sbr.rel (%p570) target = $region52
      $region51: #{text_classification_forward.1} parent=47 // pred_region
        %p573 = scmp.lt.s32.totalorder %s26, 1
        %s574 = scalar_select %p573, %s26, 1
        %s575 = smul.addr %s574, 48
        %s576 = smul.addr %s575, 4
        %s577 = scalar_lea.vmem %s4, %s576
      $region52: #{text_classification_forward.1} parent=47 // pred_fallthru
        _
      // Predicated region
      $region53: #{text_classification_forward.1} parent=47 // pred_check
        %p578 = pneg %p156
      $region54: #{text_classification_forward.1} parent=47 // pred_check_branch
        %580 = sbr.rel (%p578) target = $region56
      $region55: #{text_classification_forward.1} parent=47 // pred_region
        %p581 = scmp.lt.s32.totalorder %s26, 1
        %s582 = scalar_select %p581, %s26, 1
        %s583 = smul.addr %s582, 3
        %s584 = scalar_lea.vmem %s5, %s583
      $region56: #{text_classification_forward.1} parent=47 // pred_fallthru
        _
      // Predicated region
      $region57: #{text_classification_forward.1} parent=47 // pred_check
        %p585 = pneg %p182
      $region58: #{text_classification_forward.1} parent=47 // pred_check_branch
        %587 = sbr.rel (%p585) target = $region60
      $region59: #{text_classification_forward.1} parent=47 // pred_region
        %p588 = scmp.lt.s32.totalorder %s26, 1
        %s589 = scalar_select %p588, %s26, 1
        %s590 = smul.addr %s589, 16
        %s591 = smul.addr %s590, 4
        %s592 = scalar_lea.vmem %s6, %s591
      $region60: #{text_classification_forward.1} parent=47 // pred_fallthru
        _
      // Predicated region
      $region61: #{text_classification_forward.1} parent=47 // pred_check
        %p593 = pneg %p208
      $region62: #{text_classification_forward.1} parent=47 // pred_check_branch
        %595 = sbr.rel (%p593) target = $region64
      $region63: #{text_classification_forward.1} parent=47 // pred_region
        %p596 = scmp.lt.s32.totalorder %s26, 1
        %s597 = scalar_select %p596, %s26, 1
        %s598 = scalar_lea.vmem %s7, %s597
      $region64: #{text_classification_forward.1} parent=47 // pred_fallthru
        _
      // Predicated region
      $region65: #{text_classification_forward.1} parent=47 // pred_check
        %p599 = pneg %p234
      $region66: #{text_classification_forward.1} parent=47 // pred_check_branch
        %601 = sbr.rel (%p599) target = $region68
      $region67: #{text_classification_forward.1} parent=47 // pred_region
        %p602 = scmp.lt.s32.totalorder %s26, 1
        %s603 = scalar_select %p602, %s26, 1
        %s604 = scalar_lea.vmem %s8, %s603
      $region68: #{text_classification_forward.1} parent=47 // pred_fallthru
        _
      // Predicated region
      $region69: #{text_classification_forward.1} parent=47 // pred_check
        %p605 = pneg %p260
      $region70: #{text_classification_forward.1} parent=47 // pred_check_branch
        %607 = sbr.rel (%p605) target = $region72
      $region71: #{text_classification_forward.1} parent=47 // pred_region
        %p608 = scmp.lt.s32.totalorder %s26, 1
        %s609 = scalar_select %p608, %s26, 1
        %s610 = scalar_lea.vmem %s9, %s609
      $region72: #{text_classification_forward.1} parent=47 // pred_fallthru
        _
      // Predicated region
      $region73: #{text_classification_forward.1} parent=47 // pred_check
        %p611 = pneg %p286
      $region74: #{text_classification_forward.1} parent=47 // pred_check_branch
        %613 = sbr.rel (%p611) target = $region76
      $region75: #{text_classification_forward.1} parent=47 // pred_region
        %p614 = scmp.lt.s32.totalorder %s26, 1
        %s615 = scalar_select %p614, %s26, 1
        %s616 = smul.addr %s615, 32
        %s617 = smul.addr %s616, 4
        %s618 = scalar_lea.vmem %s10, %s617
      $region76: #{text_classification_forward.1} parent=47 // pred_fallthru
        _
      // Predicated region
      $region77: #{text_classification_forward.1} parent=47 // pred_check
        %p619 = pneg %p312
      $region78: #{text_classification_forward.1} parent=47 // pred_check_branch
        %621 = sbr.rel (%p619) target = $region80
      $region79: #{text_classification_forward.1} parent=47 // pred_region
        %p622 = scmp.lt.s32.totalorder %s26, 1
        %s623 = scalar_select %p622, %s26, 1
        %s624 = smul.addr %s623, 2
        %s625 = scalar_lea.vmem %s11, %s624
      $region80: #{text_classification_forward.1} parent=47 // pred_fallthru
        _
      // Predicated region
      $region81: #{text_classification_forward.1} parent=47 // pred_check
        %p626 = pneg %p338
      $region82: #{text_classification_forward.1} parent=47 // pred_check_branch
        %628 = sbr.rel (%p626) target = $region84
      $region83: #{text_classification_forward.1} parent=47 // pred_region
        %p629 = scmp.lt.s32.totalorder %s26, 1
        %s630 = scalar_select %p629, %s26, 1
        %s631 = smul.addr %s630, 32
        %s632 = smul.addr %s631, 4
        %s633 = scalar_lea.vmem %s12, %s632
      $region84: #{text_classification_forward.1} parent=47 // pred_fallthru
        _
      // Predicated region
      $region85: #{text_classification_forward.1} parent=47 // pred_check
        %p634 = pneg %p364
      $region86: #{text_classification_forward.1} parent=47 // pred_check_branch
        %636 = sbr.rel (%p634) target = $region88
      $region87: #{text_classification_forward.1} parent=47 // pred_region
        %p637 = scmp.lt.s32.totalorder %s26, 1
        %s638 = scalar_select %p637, %s26, 1
        %s639 = scalar_lea.vmem %s13, %s638
      $region88: #{text_classification_forward.1} parent=47 // pred_fallthru
        _
      // Predicated region
      $region89: #{text_classification_forward.1} parent=47 // pred_check
        %p640 = pneg %p390
      $region90: #{text_classification_forward.1} parent=47 // pred_check_branch
        %642 = sbr.rel (%p640) target = $region92
      $region91: #{text_classification_forward.1} parent=47 // pred_region
        %p643 = scmp.lt.s32.totalorder %s26, 1
        %s644 = scalar_select %p643, %s26, 1
        %s645 = scalar_lea.vmem %s14, %s644
      $region92: #{text_classification_forward.1} parent=47 // pred_fallthru
        _
      // Predicated region
      $region93: #{text_classification_forward.1} parent=47 // pred_check
        %p646 = pneg %p416
      $region94: #{text_classification_forward.1} parent=47 // pred_check_branch
        %648 = sbr.rel (%p646) target = $region96
      $region95: #{text_classification_forward.1} parent=47 // pred_region
        %p649 = scmp.lt.s32.totalorder %s26, 1
        %s650 = scalar_select %p649, %s26, 1
        %s651 = scalar_lea.vmem %s15, %s650
      $region96: #{text_classification_forward.1} parent=47 // pred_fallthru
        _
    $region48: #{text_classification_forward.1} parent=5 // pred_fallthru
      _
    %p652 = scmp.le.s32.totalorder 1, %s26
    %p653 = scmp.lt.s32.totalorder %s26, 3
    %p654 = pnand %p652, %p653
    %p655 = pneg %p654
    // Predicated region
    $region97: #{text_classification_forward.1} parent=5 // pred_check
      _
    $region98: #{text_classification_forward.1} parent=5 // pred_check_branch
      %657 = sbr.rel (%p654) target = $region100
    $region99: #{text_classification_forward.1} parent=5 // pred_region
      %s658 = ssub.s32 %s26, 1
      %p659 = pneg %p47
      %p660 = pneg %p44
      %p661 = pneg %p68
      %p662 = pneg %p65
      %p663 = pneg %p89
      %p664 = pneg %p86
      %p665 = pneg %p110
      %p666 = pneg %p107
      %p667 = scmp.lt.s32.totalorder %s31, 1
      %s668 = scalar_select %p667, %s31, 1
      %s669 = smul.addr %s668, 48
      %s670 = smul.addr %s669, 4
      %s671 = scalar_lea.vmem %s4, %s670
      %p672 = pneg %p136
      %p673 = pneg %p133
      %p674 = scmp.lt.s32.totalorder %s31, 1
      %s675 = scalar_select %p674, %s31, 1
      %s676 = smul.addr %s675, 3
      %s677 = scalar_lea.vmem %s5, %s676
      %p678 = pneg %p162
      %p679 = pneg %p159
      %p680 = scmp.lt.s32.totalorder %s31, 1
      %s681 = scalar_select %p680, %s31, 1
      %s682 = smul.addr %s681, 16
      %s683 = smul.addr %s682, 4
      %s684 = scalar_lea.vmem %s6, %s683
      %p685 = pneg %p188
      %p686 = pneg %p185
      %p687 = scmp.lt.s32.totalorder %s31, 1
      %s688 = scalar_select %p687, %s31, 1
      %s689 = scalar_lea.vmem %s7, %s688
      %p690 = pneg %p214
      %p691 = pneg %p211
      %p692 = scmp.lt.s32.totalorder %s31, 1
      %s693 = scalar_select %p692, %s31, 1
      %s694 = scalar_lea.vmem %s8, %s693
      %p695 = pneg %p240
      %p696 = pneg %p237
      %p697 = scmp.lt.s32.totalorder %s31, 1
      %s698 = scalar_select %p697, %s31, 1
      %s699 = scalar_lea.vmem %s9, %s698
      %p700 = pneg %p266
      %p701 = pneg %p263
      %p702 = scmp.lt.s32.totalorder %s31, 1
      %s703 = scalar_select %p702, %s31, 1
      %s704 = smul.addr %s703, 32
      %s705 = smul.addr %s704, 4
      %s706 = scalar_lea.vmem %s10, %s705
      %p707 = pneg %p292
      %p708 = pneg %p289
      %p709 = scmp.lt.s32.totalorder %s31, 1
      %s710 = scalar_select %p709, %s31, 1
      %s711 = smul.addr %s710, 2
      %s712 = scalar_lea.vmem %s11, %s711
      %p713 = pneg %p318
      %p714 = pneg %p315
      %p715 = scmp.lt.s32.totalorder %s31, 1
      %s716 = scalar_select %p715, %s31, 1
      %s717 = smul.addr %s716, 32
      %s718 = smul.addr %s717, 4
      %s719 = scalar_lea.vmem %s12, %s718
      %p720 = pneg %p344
      %p721 = pneg %p341
      %p722 = scmp.lt.s32.totalorder %s31, 1
      %s723 = scalar_select %p722, %s31, 1
      %s724 = scalar_lea.vmem %s13, %s723
      %p725 = pneg %p370
      %p726 = pneg %p367
      %p727 = scmp.lt.s32.totalorder %s31, 1
      %s728 = scalar_select %p727, %s31, 1
      %s729 = scalar_lea.vmem %s14, %s728
      %p730 = pneg %p396
      %p731 = pneg %p393
      %p732 = scmp.lt.s32.totalorder %s31, 1
      %s733 = scalar_select %p732, %s31, 1
      %s734 = scalar_lea.vmem %s15, %s733
      %p735 = pneg %p422
      %p736 = pneg %p419
      %p737 = pneg %p443
      %p738 = pneg %p440
      %p739 = pneg %p464
      %p740 = pneg %p461
      %p741 = pneg %p485
      %p742 = pneg %p482
      %p743 = pneg %p506
      %p744 = pneg %p503
      %p745 = pneg %p527
      %p746 = pneg %p524
      %p747 = scmp.lt.s32.totalorder %s31, 1
      %s748 = scalar_select %p747, %s31, 1
      %s749 = smul.addr %s748, 48
      %s750 = smul.addr %s749, 4
      %s751 = scalar_lea.vmem %s4, %s750
      %p752 = scmp.lt.s32.totalorder %s31, 1
      %s753 = scalar_select %p752, %s31, 1
      %s754 = smul.addr %s753, 3
      %s755 = scalar_lea.vmem %s5, %s754
      %p756 = scmp.lt.s32.totalorder %s31, 1
      %s757 = scalar_select %p756, %s31, 1
      %s758 = smul.addr %s757, 16
      %s759 = smul.addr %s758, 4
      %s760 = scalar_lea.vmem %s6, %s759
      %p761 = scmp.lt.s32.totalorder %s31, 1
      %s762 = scalar_select %p761, %s31, 1
      %s763 = scalar_lea.vmem %s7, %s762
      %p764 = scmp.lt.s32.totalorder %s31, 1
      %s765 = scalar_select %p764, %s31, 1
      %s766 = scalar_lea.vmem %s8, %s765
      %p767 = scmp.lt.s32.totalorder %s31, 1
      %s768 = scalar_select %p767, %s31, 1
      %s769 = scalar_lea.vmem %s9, %s768
      %p770 = scmp.lt.s32.totalorder %s31, 1
      %s771 = scalar_select %p770, %s31, 1
      %s772 = smul.addr %s771, 32
      %s773 = smul.addr %s772, 4
      %s774 = scalar_lea.vmem %s10, %s773
      %p775 = scmp.lt.s32.totalorder %s31, 1
      %s776 = scalar_select %p775, %s31, 1
      %s777 = smul.addr %s776, 2
      %s778 = scalar_lea.vmem %s11, %s777
      %p779 = scmp.lt.s32.totalorder %s31, 1
      %s780 = scalar_select %p779, %s31, 1
      %s781 = smul.addr %s780, 32
      %s782 = smul.addr %s781, 4
      %s783 = scalar_lea.vmem %s12, %s782
      %p784 = scmp.lt.s32.totalorder %s31, 1
      %s785 = scalar_select %p784, %s31, 1
      %s786 = scalar_lea.vmem %s13, %s785
      %p787 = scmp.lt.s32.totalorder %s31, 1
      %s788 = scalar_select %p787, %s31, 1
      %s789 = scalar_lea.vmem %s14, %s788
      %p790 = scmp.lt.s32.totalorder %s31, 1
      %s791 = scalar_select %p790, %s31, 1
      %s792 = scalar_lea.vmem %s15, %s791
      %p794 = scmp.eq.s32.totalorder %s31, 0
      // Predicated region
      $region101: #{text_classification_forward.1} parent=99 // pred_check
        %p795 = pneg %p794
      $region102: #{text_classification_forward.1} parent=99 // pred_check_branch
        %797 = sbr.rel (%p795) target = $region104
      $region103: #{text_classification_forward.1} parent=99 // pred_region
        %v798 = vld [vmem:[%s0] sm:$0xf]
        %v799 = vld [vmem:[%s0 + $0x4] sm:$0xf]
        %v800 = vunpack.c.l.bf16 %v798
        %v801 = vunpack.c.l.bf16 %v799
        %v802 = vld [vmem:[%s2] sm:$0x1]
        %v803 = vld [vmem:[%s3] sm:$0x1]
        %804 = vadd.xlane.f32.xlu0 %v800
        %v805 = vpop.xlane.xlu0 %804
        %806 = vadd.xlane.f32.xlu0 %v801
        %v807 = vpop.xlane.xlu0 %806
        %v808 = vrcp.pop 128.0
        %v809 = vmul.f32 %v805, %v808
        %v810 = vmul.f32 %v807, %v808
        %v811 = vmul.f32 %v800, %v800
        %v812 = vmul.f32 %v801, %v801
        %813 = vadd.xlane.f32.xlu0 %v811
        %v814 = vpop.xlane.xlu0 %813
        %815 = vadd.xlane.f32.xlu0 %v812
        %v816 = vpop.xlane.xlu0 %815
        %v817 = vmul.f32 %v814, %v808
        %v818 = vmul.f32 %v816, %v808
        %v819 = vmul.f32 %v809, %v809
        %v820 = vmul.f32 %v810, %v810
        %v821 = vsub.f32 %v817, %v819
        %v822 = vsub.f32 %v818, %v820
        %v823 = vsub.f32 %v800, %v809
        %v824 = vsub.f32 %v801, %v810
        %v825 = vadd.f32 %v821, 1e-12
        %v826 = vadd.f32 %v822, 1e-12
        %v827 = vrsqrt.pop %v825
        %v828 = vrsqrt.pop %v826
        %v829 = vmul.f32 %v823, %v827
        %v830 = vmul.f32 %v824, %v828
        %v832 = vlaneseq
        %v833 = vshrl.u32 %v832, 7
        %v834 = vsub.s32 0, %v833
        %v835 = vrot.slane %v802, %v834
        %v837 = vmul.f32 %v829, %v835
        %v838 = vmul.f32 %v830, %v835
        %v840 = vlaneseq
        %v841 = vshrl.u32 %v840, 7
        %v842 = vsub.s32 0, %v841
        %v843 = vrot.slane %v803, %v842
        %v845 = vadd.f32 %v837, %v843
        %v846 = vadd.f32 %v838, %v843
        %847 = vst [vmem:[#allocation2] sm:$0xff] %v845
        %848 = vst [vmem:[#allocation2 + $0x8] sm:$0xff] %v846
        %849 = vst [vmem:[%s20] sm:$0x3] 0.0
      $region104: #{text_classification_forward.1} parent=99 // pred_fallthru
        _
      %v850 = vld [vmem:[#allocation2] sm:$0xff]
      %v851 = vld [vmem:[#allocation2 + $0x8] sm:$0xff]
      %v852 = vpack.c.bf16 %v851, %v850
      %v853 = vld [vmem:[%s751] sm:$0xff]
      %v854 = vld [vmem:[%s751 + $0x8] sm:$0xf]
      %v855 = vld [vmem:[%s751 + $0xc] sm:$0xff]
      %v856 = vld [vmem:[%s751 + $0x14] sm:$0xf]
      %v857 = vld [vmem:[%s751 + $0x18] sm:$0xff]
      %v858 = vld [vmem:[%s751 + $0x20] sm:$0xf]
      %v859 = vld [vmem:[%s751 + $0x24] sm:$0xff]
      %v860 = vld [vmem:[%s751 + $0x2c] sm:$0xf]
      %v861 = vld [vmem:[%s751 + $0x30] sm:$0xff]
      %v862 = vld [vmem:[%s751 + $0x38] sm:$0xf]
      %v863 = vld [vmem:[%s751 + $0x3c] sm:$0xff]
      %v864 = vld [vmem:[%s751 + $0x44] sm:$0xf]
      %v865 = vld [vmem:[%s751 + $0x48] sm:$0xff]
      %v866 = vld [vmem:[%s751 + $0x50] sm:$0xf]
      %v867 = vld [vmem:[%s751 + $0x54] sm:$0xff]
      %v868 = vld [vmem:[%s751 + $0x5c] sm:$0xf]
      %v869 = vld [vmem:[%s751 + $0x60] sm:$0xff]
      %v870 = vld [vmem:[%s751 + $0x68] sm:$0xf]
      %v871 = vld [vmem:[%s751 + $0x6c] sm:$0xff]
      %v872 = vld [vmem:[%s751 + $0x74] sm:$0xf]
      %v873 = vld [vmem:[%s751 + $0x78] sm:$0xff]
      %v874 = vld [vmem:[%s751 + $0x80] sm:$0xf]
      %v875 = vld [vmem:[%s751 + $0x84] sm:$0xff]
      %v876 = vld [vmem:[%s751 + $0x8c] sm:$0xf]
      %v877 = vld [vmem:[%s751 + $0x90] sm:$0xff]
      %v878 = vld [vmem:[%s751 + $0x98] sm:$0xf]
      %v879 = vld [vmem:[%s751 + $0x9c] sm:$0xff]
      %v880 = vld [vmem:[%s751 + $0xa4] sm:$0xf]
      %v881 = vld [vmem:[%s751 + $0xa8] sm:$0xff]
      %v882 = vld [vmem:[%s751 + $0xb0] sm:$0xf]
      %v883 = vld [vmem:[%s751 + $0xb4] sm:$0xff]
      %v884 = vld [vmem:[%s751 + $0xbc] sm:$0xf]
      %v885 = vld [vmem:[%s755] sm:$0x7]
      %v887 = vlaneseq
      %v888 = vshrl.u32 %v887, 7
      %v889 = vsub.s32 0, %v888
      %v890 = vrot.slane %v885, %v889
      %v891 = vlaneseq
      %v892 = vshrl.u32 %v891, 7
      %v893 = vsub.s32 1, %v892
      %v894 = vrot.slane %v885, %v893
      %v895 = vlaneseq
      %v896 = vshrl.u32 %v895, 7
      %v897 = vsub.s32 2, %v896
      %v898 = vrot.slane %v885, %v897
      %v934 = vunpack.c.l.b16 %v853
      %v935 = vunpack.c.h.b16 %v853
      %v936 = vunpack.c.l.b16 %v854
      %v937 = vunpack.c.l.b16 %v855
      %v938 = vunpack.c.h.b16 %v855
      %v939 = vunpack.c.l.b16 %v856
      %v940 = vunpack.c.l.b16 %v857
      %v941 = vunpack.c.h.b16 %v857
      %v942 = vunpack.c.l.b16 %v858
      %v943 = vunpack.c.l.b16 %v859
      %v944 = vunpack.c.h.b16 %v859
      %v945 = vunpack.c.l.b16 %v860
      %v946 = vunpack.c.l.b16 %v861
      %v947 = vunpack.c.h.b16 %v861
      %v948 = vunpack.c.l.b16 %v862
      %v949 = vunpack.c.l.b16 %v863
      %v950 = vunpack.c.h.b16 %v863
      %v951 = vunpack.c.l.b16 %v864
      %v952 = vunpack.c.l.b16 %v865
      %v953 = vunpack.c.h.b16 %v865
      %v954 = vunpack.c.l.b16 %v866
      %v955 = vunpack.c.l.b16 %v867
      %v956 = vunpack.c.h.b16 %v867
      %v957 = vunpack.c.l.b16 %v868
      %v958 = vunpack.c.l.b16 %v869
      %v959 = vunpack.c.h.b16 %v869
      %v960 = vunpack.c.l.b16 %v870
      %v961 = vunpack.c.l.b16 %v871
      %v962 = vunpack.c.h.b16 %v871
      %v963 = vunpack.c.l.b16 %v872
      %v964 = vunpack.c.l.b16 %v873
      %v965 = vunpack.c.h.b16 %v873
      %v966 = vunpack.c.l.b16 %v874
      %v967 = vunpack.c.l.b16 %v875
      %v968 = vunpack.c.h.b16 %v875
      %v969 = vunpack.c.l.b16 %v876
      %v970 = vunpack.c.l.b16 %v877
      %v971 = vunpack.c.h.b16 %v877
      %v972 = vunpack.c.l.b16 %v878
      %v973 = vunpack.c.l.b16 %v879
      %v974 = vunpack.c.h.b16 %v879
      %v975 = vunpack.c.l.b16 %v880
      %v976 = vunpack.c.l.b16 %v881
      %v977 = vunpack.c.h.b16 %v881
      %v978 = vunpack.c.l.b16 %v882
      %v979 = vunpack.c.l.b16 %v883
      %v980 = vunpack.c.h.b16 %v883
      %v981 = vunpack.c.l.b16 %v884
      %v982 = vpack.c.b16 %v937, %v934
      %v983 = vpack.c.b16 %v938, %v935
      %v984 = vpack.c.b16 %v939, %v936
      %v985 = vpack.c.b16 %v943, %v940
      %v986 = vpack.c.b16 %v944, %v941
      %v987 = vpack.c.b16 %v945, %v942
      %v988 = vpack.c.b16 %v949, %v946
      %v989 = vpack.c.b16 %v950, %v947
      %v990 = vpack.c.b16 %v951, %v948
      %v991 = vpack.c.b16 %v955, %v952
      %v992 = vpack.c.b16 %v956, %v953
      %v993 = vpack.c.b16 %v957, %v954
      %v994 = vpack.c.b16 %v961, %v958
      %v995 = vpack.c.b16 %v962, %v959
      %v996 = vpack.c.b16 %v963, %v960
      %v997 = vpack.c.b16 %v967, %v964
      %v998 = vpack.c.b16 %v968, %v965
      %v999 = vpack.c.b16 %v969, %v966
      %v1000 = vpack.c.b16 %v973, %v970
      %v1001 = vpack.c.b16 %v974, %v971
      %v1002 = vpack.c.b16 %v975, %v972
      %v1003 = vpack.c.b16 %v979, %v976
      %v1004 = vpack.c.b16 %v980, %v977
      %v1005 = vpack.c.b16 %v981, %v978
      %1030 = vmatprep.subr.bf16.mxu0 %v1004
      %1031 = vmatpush1.bf16.msra.mxu0 %v1003
      %1032 = vmatprep.subr.bf16.mxu0 %v1001
      %1033 = vmatpush1.bf16.msra.mxu0 %v1000
      %1034 = vmatprep.subr.bf16.mxu0 %v998
      %1035 = vmatpush1.bf16.msra.mxu0 %v997
      %1036 = vmatprep.subr.bf16.mxu0 %v995
      %1037 = vmatpush1.bf16.msra.mxu0 %v994
      %1038 = vmatprep.subr.bf16.mxu0 %v992
      %1039 = vmatpush1.bf16.msra.mxu0 %v991
      %1040 = vmatprep.subr.bf16.mxu0 %v989
      %1041 = vmatpush1.bf16.msra.mxu0 %v988
      %1042 = vmatprep.subr.bf16.mxu0 %v986
      %1043 = vmatpush1.bf16.msra.mxu0 %v985
      %1044 = vmatprep.subr.bf16.mxu0 %v983
      %1045 = vmatpush1.bf16.msra.mxu0 %v982
      %1046 = vmatprep.subr.bf16.mxu0 0
      %1047 = vmatpush2.bf16.msra.mxu0 0
      %1048 = vmatprep.subr.bf16.mxu0 0
      %1049 = vmatpush2.bf16.msra.mxu0 0
      %1050 = vmatprep.subr.bf16.mxu0 0
      %1051 = vmatpush2.bf16.msra.mxu0 0
      %1052 = vmatprep.subr.bf16.mxu0 0
      %1053 = vmatpush2.bf16.msra.mxu0 0
      %1054 = vmatprep.subr.bf16.mxu0 0
      %1055 = vmatpush2.bf16.msra.mxu0 0
      %1056 = vmatprep.subr.bf16.mxu0 0
      %1057 = vmatpush2.bf16.msra.mxu0 0
      %1058 = vmatprep.subr.bf16.mxu0 0
      %1059 = vmatpush2.bf16.msra.mxu0 0
      %1060 = vmatprep.subr.bf16.mxu0 0
      %1061 = vmatpush2.bf16.msra.mxu0 0
      %1062 = vmatprep.mubr.bf16.mxu0 0
      %1063 = vmatmul.mubr.bf16.gmra.mxu0 %v852
      %v1064 = vpop.f32.mrf.mxu0
      %v1065 = vadd.f32 %v890, %v1064
      %v1066 = vpop.f32.mrf.mxu0
      %v1067 = vadd.f32 %v894, %v1066
      %v1068 = vpop.f32.mrf.mxu0
      %v1069 = vadd.f32 %v890, %v1068
      %v1070 = vpop.f32.mrf.mxu0
      %v1071 = vadd.f32 %v894, %v1070
      %1072 = vdwg.mxu0
      %1073 = vmatprep.subr.bf16.mxu0 0
      %1074 = vmatpush1.bf16.msra.mxu0 %v1005
      %1075 = vmatprep.subr.bf16.mxu0 0
      %1076 = vmatpush1.bf16.msra.mxu0 %v1002
      %1077 = vmatprep.subr.bf16.mxu0 0
      %1078 = vmatpush1.bf16.msra.mxu0 %v999
      %1079 = vmatprep.subr.bf16.mxu0 0
      %1080 = vmatpush1.bf16.msra.mxu0 %v996
      %1081 = vmatprep.subr.bf16.mxu0 0
      %1082 = vmatpush1.bf16.msra.mxu0 %v993
      %1083 = vmatprep.subr.bf16.mxu0 0
      %1084 = vmatpush1.bf16.msra.mxu0 %v990
      %1085 = vmatprep.subr.bf16.mxu0 0
      %1086 = vmatpush1.bf16.msra.mxu0 %v987
      %1087 = vmatprep.subr.bf16.mxu0 0
      %1088 = vmatpush1.bf16.msra.mxu0 %v984
      %1089 = vmatprep.subr.bf16.mxu0 0
      %1090 = vmatpush2.bf16.msra.mxu0 0
      %1091 = vmatprep.subr.bf16.mxu0 0
      %1092 = vmatpush2.bf16.msra.mxu0 0
      %1093 = vmatprep.subr.bf16.mxu0 0
      %1094 = vmatpush2.bf16.msra.mxu0 0
      %1095 = vmatprep.subr.bf16.mxu0 0
      %1096 = vmatpush2.bf16.msra.mxu0 0
      %1097 = vmatprep.subr.bf16.mxu0 0
      %1098 = vmatpush2.bf16.msra.mxu0 0
      %1099 = vmatprep.subr.bf16.mxu0 0
      %1100 = vmatpush2.bf16.msra.mxu0 0
      %1101 = vmatprep.subr.bf16.mxu0 0
      %1102 = vmatpush2.bf16.msra.mxu0 0
      %1103 = vmatprep.subr.bf16.mxu0 0
      %1104 = vmatpush2.bf16.msra.mxu0 0
      %1105 = vmatprep.mubr.bf16.mxu0 0
      %1106 = vmatmul.mubr.bf16.gmra.mxu0 %v852
      %v1107 = vpop.f32.mrf.mxu0
      %v1108 = vadd.f32 %v898, %v1107
      %v1109 = vpop.f32.mrf.mxu0
      %v1110 = vpop.f32.mrf.mxu0
      %v1111 = vadd.f32 %v898, %v1110
      %v1112 = vpop.f32.mrf.mxu0
      %1113 = vdwg.mxu0
      %v1114 = vpack.c.bf16 %v1069, %v1065
      %v1115 = vpack.c.bf16 %v1071, %v1067
      %v1116 = vpack.c.bf16 %v1111, %v1108
      %v1117 = vld [vmem:[%s760] sm:$0xf]
      %v1118 = vld [vmem:[%s760 + $0x4] sm:$0xf]
      %v1119 = vld [vmem:[%s760 + $0x8] sm:$0xf]
      %v1120 = vld [vmem:[%s760 + $0xc] sm:$0xf]
      %v1121 = vld [vmem:[%s760 + $0x10] sm:$0xf]
      %v1122 = vld [vmem:[%s760 + $0x14] sm:$0xf]
      %v1123 = vld [vmem:[%s760 + $0x18] sm:$0xf]
      %v1124 = vld [vmem:[%s760 + $0x1c] sm:$0xf]
      %v1125 = vld [vmem:[%s760 + $0x20] sm:$0xf]
      %v1126 = vld [vmem:[%s760 + $0x24] sm:$0xf]
      %v1127 = vld [vmem:[%s760 + $0x28] sm:$0xf]
      %v1128 = vld [vmem:[%s760 + $0x2c] sm:$0xf]
      %v1129 = vld [vmem:[%s760 + $0x30] sm:$0xf]
      %v1130 = vld [vmem:[%s760 + $0x34] sm:$0xf]
      %v1131 = vld [vmem:[%s760 + $0x38] sm:$0xf]
      %v1132 = vld [vmem:[%s760 + $0x3c] sm:$0xf]
      %v1133 = vld [vmem:[%s1] sm:$0x3]
      %v1134 = vlaneseq
      %v1135 = vshrl.u32 %v1134, 7
      %v1136 = vsub.s32 0, %v1135
      %v1137 = vrot.slane %v1133, %v1136
      %vm1138 = vcmask 523264
      %v1140 = vsel %vm1138, %v1114, 0
      %v1143 = vsel %vm1138, %v1115, 0
      %1145 = vmatprep.subr.bf16.mxu0 0
      %1146 = vmatpush1.bf16.xpose.msra.mxu0 0
      %1147 = vmatprep.subr.bf16.mxu0 0
      %1148 = vmatpush1.bf16.xpose.msra.mxu0 0
      %1149 = vmatprep.subr.bf16.mxu0 0
      %1150 = vmatpush1.bf16.xpose.msra.mxu0 0
      %1151 = vmatprep.subr.bf16.mxu0 0
      %1152 = vmatpush1.bf16.xpose.msra.mxu0 0
      %1153 = vmatprep.subr.bf16.mxu0 0
      %1154 = vmatpush1.bf16.xpose.msra.mxu0 0
      %1155 = vmatprep.subr.bf16.mxu0 0
      %1156 = vmatpush1.bf16.xpose.msra.mxu0 0
      %1157 = vmatprep.subr.bf16.mxu0 0
      %1158 = vmatpush1.bf16.xpose.msra.mxu0 0
      %1159 = vmatprep.subr.bf16.mxu0 0
      %1160 = vmatpush1.bf16.xpose.msra.mxu0 %v1143
      %1161 = vmatprep.subr.bf16.mxu0 0
      %1162 = vmatpush2.bf16.xpose.msra.mxu0 0
      %1163 = vmatprep.subr.bf16.mxu0 0
      %1164 = vmatpush2.bf16.xpose.msra.mxu0 0
      %1165 = vmatprep.subr.bf16.mxu0 0
      %1166 = vmatpush2.bf16.xpose.msra.mxu0 0
      %1167 = vmatprep.subr.bf16.mxu0 0
      %1168 = vmatpush2.bf16.xpose.msra.mxu0 0
      %1169 = vmatprep.subr.bf16.mxu0 0
      %1170 = vmatpush2.bf16.xpose.msra.mxu0 0
      %1171 = vmatprep.subr.bf16.mxu0 0
      %1172 = vmatpush2.bf16.xpose.msra.mxu0 0
      %1173 = vmatprep.subr.bf16.mxu0 0
      %1174 = vmatpush2.bf16.xpose.msra.mxu0 0
      %1175 = vmatprep.subr.bf16.mxu0 0
      %1176 = vmatpush2.bf16.xpose.msra.mxu0 0
      %1177 = vmatprep.mubr.bf16.mxu0 0
      %1178 = vmatmul.mubr.bf16.gmra.mxu0 %v1140
      %v1179 = vpop.f32.mrf.mxu0
      %v1180 = vadd.f32 %v1137, %v1179
      %v1181 = vpop.f32.mrf.mxu0
      %v1182 = vpop.f32.mrf.mxu0
      %v1183 = vpop.f32.mrf.mxu0
      %1184 = vdwg.mxu0
      %vm1185 = vcmask 64512
      %v1186 = vsel %vm1185, %v1180, -inf
      %1187 = vmax.xlane.f32.xlu0 %v1186
      %v1188 = vpop.xlane.xlu0 %1187
      %v1189 = vsub.f32 %v1180, %v1188
      %v1190 = vmul.f32 %v1189, 1.442695
      %v1191 = vpow.pop %v1190
      %v1192 = vsel %vm1185, %v1191, 0.0
      %1193 = vadd.xlane.f32.xlu0 %v1192
      %v1194 = vpop.xlane.xlu0 %1193
      %v1195 = vrcp.pop %v1194
      %v1196 = vmul.f32 %v1191, %v1195
      %v1197 = vpack.c.bf16 %v1196, %v1196
      %v1199 = vsel %vm1185, %v1197, 0
      %vm1201 = vcmask 1043456
      %v1203 = vsel %vm1201, %v1116, 0
      %1205 = vmatprep.subr.bf16.mxu0 0
      %1206 = vmatpush1.bf16.msra.mxu0 0
      %1207 = vmatprep.subr.bf16.mxu0 0
      %1208 = vmatpush1.bf16.msra.mxu0 0
      %1209 = vmatprep.subr.bf16.mxu0 0
      %1210 = vmatpush1.bf16.msra.mxu0 0
      %1211 = vmatprep.subr.bf16.mxu0 0
      %1212 = vmatpush1.bf16.msra.mxu0 0
      %1213 = vmatprep.subr.bf16.mxu0 0
      %1214 = vmatpush1.bf16.msra.mxu0 0
      %1215 = vmatprep.subr.bf16.mxu0 0
      %1216 = vmatpush1.bf16.msra.mxu0 0
      %1217 = vmatprep.subr.bf16.mxu0 0
      %1218 = vmatpush1.bf16.msra.mxu0 0
      %1219 = vmatprep.subr.bf16.mxu0 0
      %1220 = vmatpush1.bf16.msra.mxu0 %v1203
      %1221 = vmatprep.subr.bf16.mxu0 0
      %1222 = vmatpush2.bf16.msra.mxu0 0
      %1223 = vmatprep.subr.bf16.mxu0 0
      %1224 = vmatpush2.bf16.msra.mxu0 0
      %1225 = vmatprep.subr.bf16.mxu0 0
      %1226 = vmatpush2.bf16.msra.mxu0 0
      %1227 = vmatprep.subr.bf16.mxu0 0
      %1228 = vmatpush2.bf16.msra.mxu0 0
      %1229 = vmatprep.subr.bf16.mxu0 0
      %1230 = vmatpush2.bf16.msra.mxu0 0
      %1231 = vmatprep.subr.bf16.mxu0 0
      %1232 = vmatpush2.bf16.msra.mxu0 0
      %1233 = vmatprep.subr.bf16.mxu0 0
      %1234 = vmatpush2.bf16.msra.mxu0 0
      %1235 = vmatprep.subr.bf16.mxu0 0
      %1236 = vmatpush2.bf16.msra.mxu0 0
      %1237 = vmatprep.mubr.bf16.mxu0 0
      %1238 = vmatmul.mubr.bf16.gmra.mxu0 %v1199
      %v1239 = vpop.f32.mrf.mxu0
      %v1240 = vadd.f32 0.0, %v1239
      %v1241 = vpop.f32.mrf.mxu0
      %v1242 = vpop.f32.mrf.mxu0
      %v1243 = vpop.f32.mrf.mxu0
      %1244 = vdwg.mxu0
      %v1245 = vpack.c.bf16 %v1240, %v1240
      %1247 = vrot.lane.b32.xlu0 %v1114, 64
      %v1248 = vpop.permute.xlu0 %1247
      %1250 = vrot.lane.b32.xlu0 %v1115, 64
      %v1251 = vpop.permute.xlu0 %1250
      %v1253 = vsel %vm1138, %v1248, 0
      %v1256 = vsel %vm1138, %v1251, 0
      %1258 = vmatprep.subr.bf16.mxu0 0
      %1259 = vmatpush1.bf16.xpose.msra.mxu0 0
      %1260 = vmatprep.subr.bf16.mxu0 0
      %1261 = vmatpush1.bf16.xpose.msra.mxu0 0
      %1262 = vmatprep.subr.bf16.mxu0 0
      %1263 = vmatpush1.bf16.xpose.msra.mxu0 0
      %1264 = vmatprep.subr.bf16.mxu0 0
      %1265 = vmatpush1.bf16.xpose.msra.mxu0 0
      %1266 = vmatprep.subr.bf16.mxu0 0
      %1267 = vmatpush1.bf16.xpose.msra.mxu0 0
      %1268 = vmatprep.subr.bf16.mxu0 0
      %1269 = vmatpush1.bf16.xpose.msra.mxu0 0
      %1270 = vmatprep.subr.bf16.mxu0 0
      %1271 = vmatpush1.bf16.xpose.msra.mxu0 0
      %1272 = vmatprep.subr.bf16.mxu0 0
      %1273 = vmatpush1.bf16.xpose.msra.mxu0 %v1256
      %1274 = vmatprep.subr.bf16.mxu0 0
      %1275 = vmatpush2.bf16.xpose.msra.mxu0 0
      %1276 = vmatprep.subr.bf16.mxu0 0
      %1277 = vmatpush2.bf16.xpose.msra.mxu0 0
      %1278 = vmatprep.subr.bf16.mxu0 0
      %1279 = vmatpush2.bf16.xpose.msra.mxu0 0
      %1280 = vmatprep.subr.bf16.mxu0 0
      %1281 = vmatpush2.bf16.xpose.msra.mxu0 0
      %1282 = vmatprep.subr.bf16.mxu0 0
      %1283 = vmatpush2.bf16.xpose.msra.mxu0 0
      %1284 = vmatprep.subr.bf16.mxu0 0
      %1285 = vmatpush2.bf16.xpose.msra.mxu0 0
      %1286 = vmatprep.subr.bf16.mxu0 0
      %1287 = vmatpush2.bf16.xpose.msra.mxu0 0
      %1288 = vmatprep.subr.bf16.mxu0 0
      %1289 = vmatpush2.bf16.xpose.msra.mxu0 0
      %1290 = vmatprep.mubr.bf16.mxu0 0
      %1291 = vmatmul.mubr.bf16.gmra.mxu0 %v1253
      %v1292 = vpop.f32.mrf.mxu0
      %v1293 = vadd.f32 %v1137, %v1292
      %v1294 = vpop.f32.mrf.mxu0
      %v1295 = vpop.f32.mrf.mxu0
      %v1296 = vpop.f32.mrf.mxu0
      %1297 = vdwg.mxu0
      %v1298 = vsel %vm1185, %v1293, -inf
      %1299 = vmax.xlane.f32.xlu0 %v1298
      %v1300 = vpop.xlane.xlu0 %1299
      %v1301 = vsub.f32 %v1293, %v1300
      %v1302 = vmul.f32 %v1301, 1.442695
      %v1303 = vpow.pop %v1302
      %v1304 = vsel %vm1185, %v1303, 0.0
      %1305 = vadd.xlane.f32.xlu0 %v1304
      %v1306 = vpop.xlane.xlu0 %1305
      %v1307 = vrcp.pop %v1306
      %v1308 = vmul.f32 %v1303, %v1307
      %v1309 = vpack.c.bf16 %v1308, %v1308
      %1311 = vrot.lane.b32.xlu0 %v1116, 64
      %v1312 = vpop.permute.xlu0 %1311
      %v1314 = vsel %vm1185, %v1309, 0
      %v1317 = vsel %vm1201, %v1312, 0
      %1319 = vmatprep.subr.bf16.mxu0 0
      %1320 = vmatpush1.bf16.msra.mxu0 0
      %1321 = vmatprep.subr.bf16.mxu0 0
      %1322 = vmatpush1.bf16.msra.mxu0 0
      %1323 = vmatprep.subr.bf16.mxu0 0
      %1324 = vmatpush1.bf16.msra.mxu0 0
      %1325 = vmatprep.subr.bf16.mxu0 0
      %1326 = vmatpush1.bf16.msra.mxu0 0
      %1327 = vmatprep.subr.bf16.mxu0 0
      %1328 = vmatpush1.bf16.msra.mxu0 0
      %1329 = vmatprep.subr.bf16.mxu0 0
      %1330 = vmatpush1.bf16.msra.mxu0 0
      %1331 = vmatprep.subr.bf16.mxu0 0
      %1332 = vmatpush1.bf16.msra.mxu0 0
      %1333 = vmatprep.subr.bf16.mxu0 0
      %1334 = vmatpush1.bf16.msra.mxu0 %v1317
      %1335 = vmatprep.subr.bf16.mxu0 0
      %1336 = vmatpush2.bf16.msra.mxu0 0
      %1337 = vmatprep.subr.bf16.mxu0 0
      %1338 = vmatpush2.bf16.msra.mxu0 0
      %1339 = vmatprep.subr.bf16.mxu0 0
      %1340 = vmatpush2.bf16.msra.mxu0 0
      %1341 = vmatprep.subr.bf16.mxu0 0
      %1342 = vmatpush2.bf16.msra.mxu0 0
      %1343 = vmatprep.subr.bf16.mxu0 0
      %1344 = vmatpush2.bf16.msra.mxu0 0
      %1345 = vmatprep.subr.bf16.mxu0 0
      %1346 = vmatpush2.bf16.msra.mxu0 0
      %1347 = vmatprep.subr.bf16.mxu0 0
      %1348 = vmatpush2.bf16.msra.mxu0 0
      %1349 = vmatprep.subr.bf16.mxu0 0
      %1350 = vmatpush2.bf16.msra.mxu0 0
      %1351 = vmatprep.mubr.bf16.mxu0 0
      %1352 = vmatmul.mubr.bf16.gmra.mxu0 %v1314
      %v1353 = vpop.f32.mrf.mxu0
      %v1354 = vadd.f32 0.0, %v1353
      %v1355 = vpop.f32.mrf.mxu0
      %v1356 = vpop.f32.mrf.mxu0
      %v1357 = vpop.f32.mrf.mxu0
      %1358 = vdwg.mxu0
      %v1359 = vpack.c.bf16 %v1354, %v1354
      %v1368 = vunpack.c.l.b16 %v1125
      %v1369 = vunpack.c.l.b16 %v1126
      %v1370 = vunpack.c.l.b16 %v1127
      %v1371 = vunpack.c.l.b16 %v1128
      %v1372 = vunpack.c.l.b16 %v1129
      %v1373 = vunpack.c.l.b16 %v1130
      %v1374 = vunpack.c.l.b16 %v1131
      %v1375 = vunpack.c.l.b16 %v1132
      %v1376 = vpack.c.b16 %v1369, %v1368
      %v1377 = vpack.c.b16 %v1371, %v1370
      %v1378 = vpack.c.b16 %v1373, %v1372
      %v1379 = vpack.c.b16 %v1375, %v1374
      %v1385 = vsel %vm1138, %v1359, 0
      %1387 = vmatprep.subr.bf16.mxu0 0
      %1388 = vmatpush1.bf16.msra.mxu0 0
      %1389 = vmatprep.subr.bf16.mxu0 0
      %1390 = vmatpush1.bf16.msra.mxu0 0
      %1391 = vmatprep.subr.bf16.mxu0 0
      %1392 = vmatpush1.bf16.msra.mxu0 0
      %1393 = vmatprep.subr.bf16.mxu0 0
      %1394 = vmatpush1.bf16.msra.mxu0 0
      %1395 = vmatprep.subr.bf16.mxu0 0
      %1396 = vmatpush1.bf16.msra.mxu0 %v1379
      %1397 = vmatprep.subr.bf16.mxu0 0
      %1398 = vmatpush1.bf16.msra.mxu0 %v1378
      %1399 = vmatprep.subr.bf16.mxu0 0
      %1400 = vmatpush1.bf16.msra.mxu0 %v1377
      %1401 = vmatprep.subr.bf16.mxu0 0
      %1402 = vmatpush1.bf16.msra.mxu0 %v1376
      %1403 = vmatprep.subr.bf16.mxu0 0
      %1404 = vmatpush2.bf16.msra.mxu0 0
      %1405 = vmatprep.subr.bf16.mxu0 0
      %1406 = vmatpush2.bf16.msra.mxu0 0
      %1407 = vmatprep.subr.bf16.mxu0 0
      %1408 = vmatpush2.bf16.msra.mxu0 0
      %1409 = vmatprep.subr.bf16.mxu0 0
      %1410 = vmatpush2.bf16.msra.mxu0 0
      %1411 = vmatprep.subr.bf16.mxu0 0
      %1412 = vmatpush2.bf16.msra.mxu0 0
      %1413 = vmatprep.subr.bf16.mxu0 0
      %1414 = vmatpush2.bf16.msra.mxu0 0
      %1415 = vmatprep.subr.bf16.mxu0 0
      %1416 = vmatpush2.bf16.msra.mxu0 0
      %1417 = vmatprep.subr.bf16.mxu0 0
      %1418 = vmatpush2.bf16.msra.mxu0 0
      %1419 = vmatprep.mubr.bf16.mxu0 0
      %1420 = vmatmul.mubr.bf16.gmra.mxu0 %v1385
      %v1421 = vpop.f32.mrf.mxu0
      %v1422 = vadd.f32 0.0, %v1421
      %v1423 = vpop.f32.mrf.mxu0
      %v1424 = vpop.f32.mrf.mxu0
      %v1425 = vpop.f32.mrf.mxu0
      %1426 = vdwg.mxu0
      %v1435 = vunpack.c.l.b16 %v1117
      %v1436 = vunpack.c.l.b16 %v1118
      %v1437 = vunpack.c.l.b16 %v1119
      %v1438 = vunpack.c.l.b16 %v1120
      %v1439 = vunpack.c.l.b16 %v1121
      %v1440 = vunpack.c.l.b16 %v1122
      %v1441 = vunpack.c.l.b16 %v1123
      %v1442 = vunpack.c.l.b16 %v1124
      %v1443 = vpack.c.b16 %v1436, %v1435
      %v1444 = vpack.c.b16 %v1438, %v1437
      %v1445 = vpack.c.b16 %v1440, %v1439
      %v1446 = vpack.c.b16 %v1442, %v1441
      %v1452 = vsel %vm1138, %v1245, 0
      %1454 = vmatprep.subr.bf16.mxu0 0
      %1455 = vmatpush1.bf16.msra.mxu0 0
      %1456 = vmatprep.subr.bf16.mxu0 0
      %1457 = vmatpush1.bf16.msra.mxu0 0
      %1458 = vmatprep.subr.bf16.mxu0 0
      %1459 = vmatpush1.bf16.msra.mxu0 0
      %1460 = vmatprep.subr.bf16.mxu0 0
      %1461 = vmatpush1.bf16.msra.mxu0 0
      %1462 = vmatprep.subr.bf16.mxu0 0
      %1463 = vmatpush1.bf16.msra.mxu0 %v1446
      %1464 = vmatprep.subr.bf16.mxu0 0
      %1465 = vmatpush1.bf16.msra.mxu0 %v1445
      %1466 = vmatprep.subr.bf16.mxu0 0
      %1467 = vmatpush1.bf16.msra.mxu0 %v1444
      %1468 = vmatprep.subr.bf16.mxu0 0
      %1469 = vmatpush1.bf16.msra.mxu0 %v1443
      %1470 = vmatprep.subr.bf16.mxu0 0
      %1471 = vmatpush2.bf16.msra.mxu0 0
      %1472 = vmatprep.subr.bf16.mxu0 0
      %1473 = vmatpush2.bf16.msra.mxu0 0
      %1474 = vmatprep.subr.bf16.mxu0 0
      %1475 = vmatpush2.bf16.msra.mxu0 0
      %1476 = vmatprep.subr.bf16.mxu0 0
      %1477 = vmatpush2.bf16.msra.mxu0 0
      %1478 = vmatprep.subr.bf16.mxu0 0
      %1479 = vmatpush2.bf16.msra.mxu0 0
      %1480 = vmatprep.subr.bf16.mxu0 0
      %1481 = vmatpush2.bf16.msra.mxu0 0
      %1482 = vmatprep.subr.bf16.mxu0 0
      %1483 = vmatpush2.bf16.msra.mxu0 0
      %1484 = vmatprep.subr.bf16.mxu0 0
      %1485 = vmatpush2.bf16.msra.mxu0 0
      %1486 = vmatprep.mubr.bf16.mxu0 0
      %1487 = vmatmul.mubr.bf16.gmra.mxu0 %v1452
      %v1488 = vpop.f32.mrf.mxu0
      %v1489 = vadd.f32 %v1422, %v1488
      %v1490 = vpop.f32.mrf.mxu0
      %v1491 = vpop.f32.mrf.mxu0
      %v1492 = vpop.f32.mrf.mxu0
      %1493 = vdwg.mxu0
      %v1494 = vlaneseq
      %v1495 = vshrl.u32 %v1494, 7
      %v1496 = vsub.s32 1, %v1495
      %v1497 = vrot.slane %v1133, %v1496
      %v1498 = vrot.slane %v1114, 4
      %v1499 = vrot.slane %v1115, 4
      %v1501 = vsel %vm1138, %v1498, 0
      %v1504 = vsel %vm1138, %v1499, 0
      %1506 = vmatprep.subr.bf16.mxu0 0
      %1507 = vmatpush1.bf16.xpose.msra.mxu0 0
      %1508 = vmatprep.subr.bf16.mxu0 0
      %1509 = vmatpush1.bf16.xpose.msra.mxu0 0
      %1510 = vmatprep.subr.bf16.mxu0 0
      %1511 = vmatpush1.bf16.xpose.msra.mxu0 0
      %1512 = vmatprep.subr.bf16.mxu0 0
      %1513 = vmatpush1.bf16.xpose.msra.mxu0 0
      %1514 = vmatprep.subr.bf16.mxu0 0
      %1515 = vmatpush1.bf16.xpose.msra.mxu0 0
      %1516 = vmatprep.subr.bf16.mxu0 0
      %1517 = vmatpush1.bf16.xpose.msra.mxu0 0
      %1518 = vmatprep.subr.bf16.mxu0 0
      %1519 = vmatpush1.bf16.xpose.msra.mxu0 0
      %1520 = vmatprep.subr.bf16.mxu0 0
      %1521 = vmatpush1.bf16.xpose.msra.mxu0 %v1504
      %1522 = vmatprep.subr.bf16.mxu0 0
      %1523 = vmatpush2.bf16.xpose.msra.mxu0 0
      %1524 = vmatprep.subr.bf16.mxu0 0
      %1525 = vmatpush2.bf16.xpose.msra.mxu0 0
      %1526 = vmatprep.subr.bf16.mxu0 0
      %1527 = vmatpush2.bf16.xpose.msra.mxu0 0
      %1528 = vmatprep.subr.bf16.mxu0 0
      %1529 = vmatpush2.bf16.xpose.msra.mxu0 0
      %1530 = vmatprep.subr.bf16.mxu0 0
      %1531 = vmatpush2.bf16.xpose.msra.mxu0 0
      %1532 = vmatprep.subr.bf16.mxu0 0
      %1533 = vmatpush2.bf16.xpose.msra.mxu0 0
      %1534 = vmatprep.subr.bf16.mxu0 0
      %1535 = vmatpush2.bf16.xpose.msra.mxu0 0
      %1536 = vmatprep.subr.bf16.mxu0 0
      %1537 = vmatpush2.bf16.xpose.msra.mxu0 0
      %1538 = vmatprep.mubr.bf16.mxu0 0
      %1539 = vmatmul.mubr.bf16.gmra.mxu0 %v1501
      %v1540 = vpop.f32.mrf.mxu0
      %v1541 = vadd.f32 %v1497, %v1540
      %v1542 = vpop.f32.mrf.mxu0
      %v1543 = vpop.f32.mrf.mxu0
      %v1544 = vpop.f32.mrf.mxu0
      %1545 = vdwg.mxu0
      %v1546 = vsel %vm1185, %v1541, -inf
      %1547 = vmax.xlane.f32.xlu0 %v1546
      %v1548 = vpop.xlane.xlu0 %1547
      %v1549 = vsub.f32 %v1541, %v1548
      %v1550 = vmul.f32 %v1549, 1.442695
      %v1551 = vpow.pop %v1550
      %v1552 = vsel %vm1185, %v1551, 0.0
      %1553 = vadd.xlane.f32.xlu0 %v1552
      %v1554 = vpop.xlane.xlu0 %1553
      %v1555 = vrcp.pop %v1554
      %v1556 = vmul.f32 %v1551, %v1555
      %v1557 = vpack.c.bf16 %v1556, %v1556
      %v1558 = vrot.slane %v1116, 4
      %v1560 = vsel %vm1185, %v1557, 0
      %v1563 = vsel %vm1201, %v1558, 0
      %1565 = vmatprep.subr.bf16.mxu0 0
      %1566 = vmatpush1.bf16.msra.mxu0 0
      %1567 = vmatprep.subr.bf16.mxu0 0
      %1568 = vmatpush1.bf16.msra.mxu0 0
      %1569 = vmatprep.subr.bf16.mxu0 0
      %1570 = vmatpush1.bf16.msra.mxu0 0
      %1571 = vmatprep.subr.bf16.mxu0 0
      %1572 = vmatpush1.bf16.msra.mxu0 0
      %1573 = vmatprep.subr.bf16.mxu0 0
      %1574 = vmatpush1.bf16.msra.mxu0 0
      %1575 = vmatprep.subr.bf16.mxu0 0
      %1576 = vmatpush1.bf16.msra.mxu0 0
      %1577 = vmatprep.subr.bf16.mxu0 0
      %1578 = vmatpush1.bf16.msra.mxu0 0
      %1579 = vmatprep.subr.bf16.mxu0 0
      %1580 = vmatpush1.bf16.msra.mxu0 %v1563
      %1581 = vmatprep.subr.bf16.mxu0 0
      %1582 = vmatpush2.bf16.msra.mxu0 0
      %1583 = vmatprep.subr.bf16.mxu0 0
      %1584 = vmatpush2.bf16.msra.mxu0 0
      %1585 = vmatprep.subr.bf16.mxu0 0
      %1586 = vmatpush2.bf16.msra.mxu0 0
      %1587 = vmatprep.subr.bf16.mxu0 0
      %1588 = vmatpush2.bf16.msra.mxu0 0
      %1589 = vmatprep.subr.bf16.mxu0 0
      %1590 = vmatpush2.bf16.msra.mxu0 0
      %1591 = vmatprep.subr.bf16.mxu0 0
      %1592 = vmatpush2.bf16.msra.mxu0 0
      %1593 = vmatprep.subr.bf16.mxu0 0
      %1594 = vmatpush2.bf16.msra.mxu0 0
      %1595 = vmatprep.subr.bf16.mxu0 0
      %1596 = vmatpush2.bf16.msra.mxu0 0
      %1597 = vmatprep.mubr.bf16.mxu0 0
      %1598 = vmatmul.mubr.bf16.gmra.mxu0 %v1560
      %v1599 = vpop.f32.mrf.mxu0
      %v1600 = vadd.f32 0.0, %v1599
      %v1601 = vpop.f32.mrf.mxu0
      %v1602 = vpop.f32.mrf.mxu0
      %v1603 = vpop.f32.mrf.mxu0
      %1604 = vdwg.mxu0
      %v1605 = vpack.c.bf16 %v1600, %v1600
      %1606 = vrot.lane.b32.xlu0 %v1498, 64
      %v1607 = vpop.permute.xlu0 %1606
      %1608 = vrot.lane.b32.xlu0 %v1499, 64
      %v1609 = vpop.permute.xlu0 %1608
      %v1611 = vsel %vm1138, %v1607, 0
      %v1614 = vsel %vm1138, %v1609, 0
      %1616 = vmatprep.subr.bf16.mxu0 0
      %1617 = vmatpush1.bf16.xpose.msra.mxu0 0
      %1618 = vmatprep.subr.bf16.mxu0 0
      %1619 = vmatpush1.bf16.xpose.msra.mxu0 0
      %1620 = vmatprep.subr.bf16.mxu0 0
      %1621 = vmatpush1.bf16.xpose.msra.mxu0 0
      %1622 = vmatprep.subr.bf16.mxu0 0
      %1623 = vmatpush1.bf16.xpose.msra.mxu0 0
      %1624 = vmatprep.subr.bf16.mxu0 0
      %1625 = vmatpush1.bf16.xpose.msra.mxu0 0
      %1626 = vmatprep.subr.bf16.mxu0 0
      %1627 = vmatpush1.bf16.xpose.msra.mxu0 0
      %1628 = vmatprep.subr.bf16.mxu0 0
      %1629 = vmatpush1.bf16.xpose.msra.mxu0 0
      %1630 = vmatprep.subr.bf16.mxu0 0
      %1631 = vmatpush1.bf16.xpose.msra.mxu0 %v1614
      %1632 = vmatprep.subr.bf16.mxu0 0
      %1633 = vmatpush2.bf16.xpose.msra.mxu0 0
      %1634 = vmatprep.subr.bf16.mxu0 0
      %1635 = vmatpush2.bf16.xpose.msra.mxu0 0
      %1636 = vmatprep.subr.bf16.mxu0 0
      %1637 = vmatpush2.bf16.xpose.msra.mxu0 0
      %1638 = vmatprep.subr.bf16.mxu0 0
      %1639 = vmatpush2.bf16.xpose.msra.mxu0 0
      %1640 = vmatprep.subr.bf16.mxu0 0
      %1641 = vmatpush2.bf16.xpose.msra.mxu0 0
      %1642 = vmatprep.subr.bf16.mxu0 0
      %1643 = vmatpush2.bf16.xpose.msra.mxu0 0
      %1644 = vmatprep.subr.bf16.mxu0 0
      %1645 = vmatpush2.bf16.xpose.msra.mxu0 0
      %1646 = vmatprep.subr.bf16.mxu0 0
      %1647 = vmatpush2.bf16.xpose.msra.mxu0 0
      %1648 = vmatprep.mubr.bf16.mxu0 0
      %1649 = vmatmul.mubr.bf16.gmra.mxu0 %v1611
      %v1650 = vpop.f32.mrf.mxu0
      %v1651 = vadd.f32 %v1497, %v1650
      %v1652 = vpop.f32.mrf.mxu0
      %v1653 = vpop.f32.mrf.mxu0
      %v1654 = vpop.f32.mrf.mxu0
      %1655 = vdwg.mxu0
      %v1656 = vsel %vm1185, %v1651, -inf
      %1657 = vmax.xlane.f32.xlu0 %v1656
      %v1658 = vpop.xlane.xlu0 %1657
      %v1659 = vsub.f32 %v1651, %v1658
      %v1660 = vmul.f32 %v1659, 1.442695
      %v1661 = vpow.pop %v1660
      %v1662 = vsel %vm1185, %v1661, 0.0
      %1663 = vadd.xlane.f32.xlu0 %v1662
      %v1664 = vpop.xlane.xlu0 %1663
      %v1665 = vrcp.pop %v1664
      %v1666 = vmul.f32 %v1661, %v1665
      %v1667 = vpack.c.bf16 %v1666, %v1666
      %1668 = vrot.lane.b32.xlu0 %v1558, 64
      %v1669 = vpop.permute.xlu0 %1668
      %v1671 = vsel %vm1185, %v1667, 0
      %v1674 = vsel %vm1201, %v1669, 0
      %1676 = vmatprep.subr.bf16.mxu0 0
      %1677 = vmatpush1.bf16.msra.mxu0 0
      %1678 = vmatprep.subr.bf16.mxu0 0
      %1679 = vmatpush1.bf16.msra.mxu0 0
      %1680 = vmatprep.subr.bf16.mxu0 0
      %1681 = vmatpush1.bf16.msra.mxu0 0
      %1682 = vmatprep.subr.bf16.mxu0 0
      %1683 = vmatpush1.bf16.msra.mxu0 0
      %1684 = vmatprep.subr.bf16.mxu0 0
      %1685 = vmatpush1.bf16.msra.mxu0 0
      %1686 = vmatprep.subr.bf16.mxu0 0
      %1687 = vmatpush1.bf16.msra.mxu0 0
      %1688 = vmatprep.subr.bf16.mxu0 0
      %1689 = vmatpush1.bf16.msra.mxu0 0
      %1690 = vmatprep.subr.bf16.mxu0 0
      %1691 = vmatpush1.bf16.msra.mxu0 %v1674
      %1692 = vmatprep.subr.bf16.mxu0 0
      %1693 = vmatpush2.bf16.msra.mxu0 0
      %1694 = vmatprep.subr.bf16.mxu0 0
      %1695 = vmatpush2.bf16.msra.mxu0 0
      %1696 = vmatprep.subr.bf16.mxu0 0
      %1697 = vmatpush2.bf16.msra.mxu0 0
      %1698 = vmatprep.subr.bf16.mxu0 0
      %1699 = vmatpush2.bf16.msra.mxu0 0
      %1700 = vmatprep.subr.bf16.mxu0 0
      %1701 = vmatpush2.bf16.msra.mxu0 0
      %1702 = vmatprep.subr.bf16.mxu0 0
      %1703 = vmatpush2.bf16.msra.mxu0 0
      %1704 = vmatprep.subr.bf16.mxu0 0
      %1705 = vmatpush2.bf16.msra.mxu0 0
      %1706 = vmatprep.subr.bf16.mxu0 0
      %1707 = vmatpush2.bf16.msra.mxu0 0
      %1708 = vmatprep.mubr.bf16.mxu0 0
      %1709 = vmatmul.mubr.bf16.gmra.mxu0 %v1671
      %v1710 = vpop.f32.mrf.mxu0
      %v1711 = vadd.f32 0.0, %v1710
      %v1712 = vpop.f32.mrf.mxu0
      %v1713 = vpop.f32.mrf.mxu0
      %v1714 = vpop.f32.mrf.mxu0
      %1715 = vdwg.mxu0
      %v1716 = vpack.c.bf16 %v1711, %v1711
      %v1718 = vsel %vm1138, %v1716, 0
      %1720 = vmatprep.subr.bf16.mxu0 0
      %1721 = vmatpush1.bf16.msra.mxu0 0
      %1722 = vmatprep.subr.bf16.mxu0 0
      %1723 = vmatpush1.bf16.msra.mxu0 0
      %1724 = vmatprep.subr.bf16.mxu0 0
      %1725 = vmatpush1.bf16.msra.mxu0 0
      %1726 = vmatprep.subr.bf16.mxu0 0
      %1727 = vmatpush1.bf16.msra.mxu0 0
      %1728 = vmatprep.subr.bf16.mxu0 0
      %1729 = vmatpush1.bf16.msra.mxu0 %v1379
      %1730 = vmatprep.subr.bf16.mxu0 0
      %1731 = vmatpush1.bf16.msra.mxu0 %v1378
      %1732 = vmatprep.subr.bf16.mxu0 0
      %1733 = vmatpush1.bf16.msra.mxu0 %v1377
      %1734 = vmatprep.subr.bf16.mxu0 0
      %1735 = vmatpush1.bf16.msra.mxu0 %v1376
      %1736 = vmatprep.subr.bf16.mxu0 0
      %1737 = vmatpush2.bf16.msra.mxu0 0
      %1738 = vmatprep.subr.bf16.mxu0 0
      %1739 = vmatpush2.bf16.msra.mxu0 0
      %1740 = vmatprep.subr.bf16.mxu0 0
      %1741 = vmatpush2.bf16.msra.mxu0 0
      %1742 = vmatprep.subr.bf16.mxu0 0
      %1743 = vmatpush2.bf16.msra.mxu0 0
      %1744 = vmatprep.subr.bf16.mxu0 0
      %1745 = vmatpush2.bf16.msra.mxu0 0
      %1746 = vmatprep.subr.bf16.mxu0 0
      %1747 = vmatpush2.bf16.msra.mxu0 0
      %1748 = vmatprep.subr.bf16.mxu0 0
      %1749 = vmatpush2.bf16.msra.mxu0 0
      %1750 = vmatprep.subr.bf16.mxu0 0
      %1751 = vmatpush2.bf16.msra.mxu0 0
      %1752 = vmatprep.mubr.bf16.mxu0 0
      %1753 = vmatmul.mubr.bf16.gmra.mxu0 %v1718
      %v1754 = vpop.f32.mrf.mxu0
      %v1755 = vadd.f32 0.0, %v1754
      %v1756 = vpop.f32.mrf.mxu0
      %v1757 = vpop.f32.mrf.mxu0
      %v1758 = vpop.f32.mrf.mxu0
      %1759 = vdwg.mxu0
      %v1761 = vsel %vm1138, %v1605, 0
      %1763 = vmatprep.subr.bf16.mxu0 0
      %1764 = vmatpush1.bf16.msra.mxu0 0
      %1765 = vmatprep.subr.bf16.mxu0 0
      %1766 = vmatpush1.bf16.msra.mxu0 0
      %1767 = vmatprep.subr.bf16.mxu0 0
      %1768 = vmatpush1.bf16.msra.mxu0 0
      %1769 = vmatprep.subr.bf16.mxu0 0
      %1770 = vmatpush1.bf16.msra.mxu0 0
      %1771 = vmatprep.subr.bf16.mxu0 0
      %1772 = vmatpush1.bf16.msra.mxu0 %v1446
      %1773 = vmatprep.subr.bf16.mxu0 0
      %1774 = vmatpush1.bf16.msra.mxu0 %v1445
      %1775 = vmatprep.subr.bf16.mxu0 0
      %1776 = vmatpush1.bf16.msra.mxu0 %v1444
      %1777 = vmatprep.subr.bf16.mxu0 0
      %1778 = vmatpush1.bf16.msra.mxu0 %v1443
      %1779 = vmatprep.subr.bf16.mxu0 0
      %1780 = vmatpush2.bf16.msra.mxu0 0
      %1781 = vmatprep.subr.bf16.mxu0 0
      %1782 = vmatpush2.bf16.msra.mxu0 0
      %1783 = vmatprep.subr.bf16.mxu0 0
      %1784 = vmatpush2.bf16.msra.mxu0 0
      %1785 = vmatprep.subr.bf16.mxu0 0
      %1786 = vmatpush2.bf16.msra.mxu0 0
      %1787 = vmatprep.subr.bf16.mxu0 0
      %1788 = vmatpush2.bf16.msra.mxu0 0
      %1789 = vmatprep.subr.bf16.mxu0 0
      %1790 = vmatpush2.bf16.msra.mxu0 0
      %1791 = vmatprep.subr.bf16.mxu0 0
      %1792 = vmatpush2.bf16.msra.mxu0 0
      %1793 = vmatprep.subr.bf16.mxu0 0
      %1794 = vmatpush2.bf16.msra.mxu0 0
      %1795 = vmatprep.mubr.bf16.mxu0 0
      %1796 = vmatmul.mubr.bf16.gmra.mxu0 %v1761
      %v1797 = vpop.f32.mrf.mxu0
      %v1798 = vadd.f32 %v1755, %v1797
      %v1799 = vpop.f32.mrf.mxu0
      %v1800 = vpop.f32.mrf.mxu0
      %v1801 = vpop.f32.mrf.mxu0
      %1802 = vdwg.mxu0
      %v1803 = vld [vmem:[%s763] sm:$0x1]
      %v1805 = vlaneseq
      %v1806 = vshrl.u32 %v1805, 7
      %v1807 = vsub.s32 0, %v1806
      %v1808 = vrot.slane %v1803, %v1807
      %v1810 = vadd.f32 %v1489, %v1808
      %v1811 = vadd.f32 %v1798, %v1808
      %v1812 = vadd.f32 %v850, %v1810
      %v1813 = vadd.f32 %v851, %v1811
      %v1814 = vld [vmem:[%s766] sm:$0x1]
      %v1815 = vld [vmem:[%s769] sm:$0x1]
      %1816 = vadd.xlane.f32.xlu0 %v1812
      %v1817 = vpop.xlane.xlu0 %1816
      %1818 = vadd.xlane.f32.xlu0 %v1813
      %v1819 = vpop.xlane.xlu0 %1818
      %v1820 = vrcp.pop 128.0
      %v1821 = vmul.f32 %v1817, %v1820
      %v1822 = vmul.f32 %v1819, %v1820
      %v1823 = vmul.f32 %v1812, %v1812
      %v1824 = vmul.f32 %v1813, %v1813
      %1825 = vadd.xlane.f32.xlu0 %v1823
      %v1826 = vpop.xlane.xlu0 %1825
      %1827 = vadd.xlane.f32.xlu0 %v1824
      %v1828 = vpop.xlane.xlu0 %1827
      %v1829 = vmul.f32 %v1826, %v1820
      %v1830 = vmul.f32 %v1828, %v1820
      %v1831 = vmul.f32 %v1821, %v1821
      %v1832 = vmul.f32 %v1822, %v1822
      %v1833 = vsub.f32 %v1829, %v1831
      %v1834 = vsub.f32 %v1830, %v1832
      %v1835 = vsub.f32 %v1812, %v1821
      %v1836 = vsub.f32 %v1813, %v1822
      %v1837 = vadd.f32 %v1833, 1e-12
      %v1838 = vadd.f32 %v1834, 1e-12
      %v1839 = vrsqrt.pop %v1837
      %v1840 = vrsqrt.pop %v1838
      %v1841 = vmul.f32 %v1835, %v1839
      %v1842 = vmul.f32 %v1836, %v1840
      %v1844 = vlaneseq
      %v1845 = vshrl.u32 %v1844, 7
      %v1846 = vsub.s32 0, %v1845
      %v1847 = vrot.slane %v1814, %v1846
      %v1849 = vmul.f32 %v1841, %v1847
      %v1850 = vmul.f32 %v1842, %v1847
      %v1852 = vlaneseq
      %v1853 = vshrl.u32 %v1852, 7
      %v1854 = vsub.s32 0, %v1853
      %v1855 = vrot.slane %v1815, %v1854
      %v1857 = vadd.f32 %v1849, %v1855
      %v1858 = vadd.f32 %v1850, %v1855
      %v1859 = vpack.c.bf16 %v1858, %v1857
      %v1860 = vld [vmem:[%s774] sm:$0xff]
      %v1861 = vld [vmem:[%s774 + $0x8] sm:$0xff]
      %v1862 = vld [vmem:[%s774 + $0x10] sm:$0xff]
      %v1863 = vld [vmem:[%s774 + $0x18] sm:$0xff]
      %v1864 = vld [vmem:[%s774 + $0x20] sm:$0xff]
      %v1865 = vld [vmem:[%s774 + $0x28] sm:$0xff]
      %v1866 = vld [vmem:[%s774 + $0x30] sm:$0xff]
      %v1867 = vld [vmem:[%s774 + $0x38] sm:$0xff]
      %v1868 = vld [vmem:[%s774 + $0x40] sm:$0xff]
      %v1869 = vld [vmem:[%s774 + $0x48] sm:$0xff]
      %v1870 = vld [vmem:[%s774 + $0x50] sm:$0xff]
      %v1871 = vld [vmem:[%s774 + $0x58] sm:$0xff]
      %v1872 = vld [vmem:[%s774 + $0x60] sm:$0xff]
      %v1873 = vld [vmem:[%s774 + $0x68] sm:$0xff]
      %v1874 = vld [vmem:[%s774 + $0x70] sm:$0xff]
      %v1875 = vld [vmem:[%s774 + $0x78] sm:$0xff]
      %v1876 = vld [vmem:[%s778] sm:$0x3]
      %v1878 = vlaneseq
      %v1879 = vshrl.u32 %v1878, 7
      %v1880 = vsub.s32 0, %v1879
      %v1881 = vrot.slane %v1876, %v1880
      %v1882 = vlaneseq
      %v1883 = vshrl.u32 %v1882, 7
      %v1884 = vsub.s32 1, %v1883
      %v1885 = vrot.slane %v1876, %v1884
      %v1904 = vunpack.c.l.b16 %v1860
      %v1905 = vunpack.c.h.b16 %v1860
      %v1906 = vunpack.c.l.b16 %v1861
      %v1907 = vunpack.c.h.b16 %v1861
      %v1908 = vunpack.c.l.b16 %v1862
      %v1909 = vunpack.c.h.b16 %v1862
      %v1910 = vunpack.c.l.b16 %v1863
      %v1911 = vunpack.c.h.b16 %v1863
      %v1912 = vunpack.c.l.b16 %v1864
      %v1913 = vunpack.c.h.b16 %v1864
      %v1914 = vunpack.c.l.b16 %v1865
      %v1915 = vunpack.c.h.b16 %v1865
      %v1916 = vunpack.c.l.b16 %v1866
      %v1917 = vunpack.c.h.b16 %v1866
      %v1918 = vunpack.c.l.b16 %v1867
      %v1919 = vunpack.c.h.b16 %v1867
      %v1920 = vunpack.c.l.b16 %v1868
      %v1921 = vunpack.c.h.b16 %v1868
      %v1922 = vunpack.c.l.b16 %v1869
      %v1923 = vunpack.c.h.b16 %v1869
      %v1924 = vunpack.c.l.b16 %v1870
      %v1925 = vunpack.c.h.b16 %v1870
      %v1926 = vunpack.c.l.b16 %v1871
      %v1927 = vunpack.c.h.b16 %v1871
      %v1928 = vunpack.c.l.b16 %v1872
      %v1929 = vunpack.c.h.b16 %v1872
      %v1930 = vunpack.c.l.b16 %v1873
      %v1931 = vunpack.c.h.b16 %v1873
      %v1932 = vunpack.c.l.b16 %v1874
      %v1933 = vunpack.c.h.b16 %v1874
      %v1934 = vunpack.c.l.b16 %v1875
      %v1935 = vunpack.c.h.b16 %v1875
      %v1936 = vpack.c.b16 %v1906, %v1904
      %v1937 = vpack.c.b16 %v1907, %v1905
      %v1938 = vpack.c.b16 %v1910, %v1908
      %v1939 = vpack.c.b16 %v1911, %v1909
      %v1940 = vpack.c.b16 %v1914, %v1912
      %v1941 = vpack.c.b16 %v1915, %v1913
      %v1942 = vpack.c.b16 %v1918, %v1916
      %v1943 = vpack.c.b16 %v1919, %v1917
      %v1944 = vpack.c.b16 %v1922, %v1920
      %v1945 = vpack.c.b16 %v1923, %v1921
      %v1946 = vpack.c.b16 %v1926, %v1924
      %v1947 = vpack.c.b16 %v1927, %v1925
      %v1948 = vpack.c.b16 %v1930, %v1928
      %v1949 = vpack.c.b16 %v1931, %v1929
      %v1950 = vpack.c.b16 %v1934, %v1932
      %v1951 = vpack.c.b16 %v1935, %v1933
      %1968 = vmatprep.subr.bf16.mxu0 %v1951
      %1969 = vmatpush1.bf16.msra.mxu0 %v1950
      %1970 = vmatprep.subr.bf16.mxu0 %v1949
      %1971 = vmatpush1.bf16.msra.mxu0 %v1948
      %1972 = vmatprep.subr.bf16.mxu0 %v1947
      %1973 = vmatpush1.bf16.msra.mxu0 %v1946
      %1974 = vmatprep.subr.bf16.mxu0 %v1945
      %1975 = vmatpush1.bf16.msra.mxu0 %v1944
      %1976 = vmatprep.subr.bf16.mxu0 %v1943
      %1977 = vmatpush1.bf16.msra.mxu0 %v1942
      %1978 = vmatprep.subr.bf16.mxu0 %v1941
      %1979 = vmatpush1.bf16.msra.mxu0 %v1940
      %1980 = vmatprep.subr.bf16.mxu0 %v1939
      %1981 = vmatpush1.bf16.msra.mxu0 %v1938
      %1982 = vmatprep.subr.bf16.mxu0 %v1937
      %1983 = vmatpush1.bf16.msra.mxu0 %v1936
      %1984 = vmatprep.subr.bf16.mxu0 0
      %1985 = vmatpush2.bf16.msra.mxu0 0
      %1986 = vmatprep.subr.bf16.mxu0 0
      %1987 = vmatpush2.bf16.msra.mxu0 0
      %1988 = vmatprep.subr.bf16.mxu0 0
      %1989 = vmatpush2.bf16.msra.mxu0 0
      %1990 = vmatprep.subr.bf16.mxu0 0
      %1991 = vmatpush2.bf16.msra.mxu0 0
      %1992 = vmatprep.subr.bf16.mxu0 0
      %1993 = vmatpush2.bf16.msra.mxu0 0
      %1994 = vmatprep.subr.bf16.mxu0 0
      %1995 = vmatpush2.bf16.msra.mxu0 0
      %1996 = vmatprep.subr.bf16.mxu0 0
      %1997 = vmatpush2.bf16.msra.mxu0 0
      %1998 = vmatprep.subr.bf16.mxu0 0
      %1999 = vmatpush2.bf16.msra.mxu0 0
      %2000 = vmatprep.mubr.bf16.mxu0 0
      %2001 = vmatmul.mubr.bf16.gmra.mxu0 %v1859
      %v2002 = vpop.f32.mrf.mxu0
      %v2003 = vadd.f32 %v1881, %v2002
      %v2004 = vpop.f32.mrf.mxu0
      %v2005 = vadd.f32 %v1885, %v2004
      %v2006 = vpop.f32.mrf.mxu0
      %v2007 = vadd.f32 %v1881, %v2006
      %v2008 = vpop.f32.mrf.mxu0
      %v2009 = vadd.f32 %v1885, %v2008
      %2010 = vdwg.mxu0
      %v2011 = vmul.f32 %v2003, %v2003
      %v2012 = vmul.f32 %v2005, %v2005
      %v2013 = vmul.f32 %v2007, %v2007
      %v2014 = vmul.f32 %v2009, %v2009
      %v2015 = vmul.f32 %v2003, %v2011
      %v2016 = vmul.f32 %v2005, %v2012
      %v2017 = vmul.f32 %v2007, %v2013
      %v2018 = vmul.f32 %v2009, %v2014
      %v2019 = vmul.f32 %v2015, 0.044715
      %v2020 = vmul.f32 %v2016, 0.044715
      %v2021 = vmul.f32 %v2017, 0.044715
      %v2022 = vmul.f32 %v2018, 0.044715
      %v2023 = vadd.f32 %v2003, %v2019
      %v2024 = vadd.f32 %v2005, %v2020
      %v2025 = vadd.f32 %v2007, %v2021
      %v2026 = vadd.f32 %v2009, %v2022
      %v2027 = vmul.f32 %v2023, 0.7978846
      %v2028 = vmul.f32 %v2024, 0.7978846
      %v2029 = vmul.f32 %v2025, 0.7978846
      %v2030 = vmul.f32 %v2026, 0.7978846
      %v2031 = vtanh.pop %v2027
      %v2032 = vtanh.pop %v2028
      %v2033 = vtanh.pop %v2029
      %v2034 = vtanh.pop %v2030
      %v2035 = vadd.f32 %v2031, 1.0
      %v2036 = vadd.f32 %v2032, 1.0
      %v2037 = vadd.f32 %v2033, 1.0
      %v2038 = vadd.f32 %v2034, 1.0
      %v2039 = vmul.f32 %v2035, 0.5
      %v2040 = vmul.f32 %v2036, 0.5
      %v2041 = vmul.f32 %v2037, 0.5
      %v2042 = vmul.f32 %v2038, 0.5
      %v2043 = vmul.f32 %v2003, %v2039
      %v2044 = vmul.f32 %v2005, %v2040
      %v2045 = vmul.f32 %v2007, %v2041
      %v2046 = vmul.f32 %v2009, %v2042
      %v2047 = vpack.c.bf16 %v2045, %v2043
      %v2048 = vpack.c.bf16 %v2046, %v2044
      %v2049 = vld [vmem:[%s783] sm:$0xf]
      %v2050 = vld [vmem:[%s783 + $0x4] sm:$0xf]
      %v2051 = vld [vmem:[%s783 + $0x8] sm:$0xf]
      %v2052 = vld [vmem:[%s783 + $0xc] sm:$0xf]
      %v2053 = vld [vmem:[%s783 + $0x10] sm:$0xf]
      %v2054 = vld [vmem:[%s783 + $0x14] sm:$0xf]
      %v2055 = vld [vmem:[%s783 + $0x18] sm:$0xf]
      %v2056 = vld [vmem:[%s783 + $0x1c] sm:$0xf]
      %v2057 = vld [vmem:[%s783 + $0x20] sm:$0xf]
      %v2058 = vld [vmem:[%s783 + $0x24] sm:$0xf]
      %v2059 = vld [vmem:[%s783 + $0x28] sm:$0xf]
      %v2060 = vld [vmem:[%s783 + $0x2c] sm:$0xf]
      %v2061 = vld [vmem:[%s783 + $0x30] sm:$0xf]
      %v2062 = vld [vmem:[%s783 + $0x34] sm:$0xf]
      %v2063 = vld [vmem:[%s783 + $0x38] sm:$0xf]
      %v2064 = vld [vmem:[%s783 + $0x3c] sm:$0xf]
      %v2065 = vld [vmem:[%s783 + $0x40] sm:$0xf]
      %v2066 = vld [vmem:[%s783 + $0x44] sm:$0xf]
      %v2067 = vld [vmem:[%s783 + $0x48] sm:$0xf]
      %v2068 = vld [vmem:[%s783 + $0x4c] sm:$0xf]
      %v2069 = vld [vmem:[%s783 + $0x50] sm:$0xf]
      %v2070 = vld [vmem:[%s783 + $0x54] sm:$0xf]
      %v2071 = vld [vmem:[%s783 + $0x58] sm:$0xf]
      %v2072 = vld [vmem:[%s783 + $0x5c] sm:$0xf]
      %v2073 = vld [vmem:[%s783 + $0x60] sm:$0xf]
      %v2074 = vld [vmem:[%s783 + $0x64] sm:$0xf]
      %v2075 = vld [vmem:[%s783 + $0x68] sm:$0xf]
      %v2076 = vld [vmem:[%s783 + $0x6c] sm:$0xf]
      %v2077 = vld [vmem:[%s783 + $0x70] sm:$0xf]
      %v2078 = vld [vmem:[%s783 + $0x74] sm:$0xf]
      %v2079 = vld [vmem:[%s783 + $0x78] sm:$0xf]
      %v2080 = vld [vmem:[%s783 + $0x7c] sm:$0xf]
      %v2081 = vld [vmem:[%s786] sm:$0x1]
      %v2083 = vlaneseq
      %v2084 = vshrl.u32 %v2083, 7
      %v2085 = vsub.s32 0, %v2084
      %v2086 = vrot.slane %v2081, %v2085
      %v2120 = vunpack.c.l.b16 %v2049
      %v2121 = vunpack.c.l.b16 %v2050
      %v2122 = vunpack.c.l.b16 %v2051
      %v2123 = vunpack.c.l.b16 %v2052
      %v2124 = vunpack.c.l.b16 %v2053
      %v2125 = vunpack.c.l.b16 %v2054
      %v2126 = vunpack.c.l.b16 %v2055
      %v2127 = vunpack.c.l.b16 %v2056
      %v2128 = vunpack.c.l.b16 %v2057
      %v2129 = vunpack.c.l.b16 %v2058
      %v2130 = vunpack.c.l.b16 %v2059
      %v2131 = vunpack.c.l.b16 %v2060
      %v2132 = vunpack.c.l.b16 %v2061
      %v2133 = vunpack.c.l.b16 %v2062
      %v2134 = vunpack.c.l.b16 %v2063
      %v2135 = vunpack.c.l.b16 %v2064
      %v2136 = vunpack.c.l.b16 %v2065
      %v2137 = vunpack.c.l.b16 %v2066
      %v2138 = vunpack.c.l.b16 %v2067
      %v2139 = vunpack.c.l.b16 %v2068
      %v2140 = vunpack.c.l.b16 %v2069
      %v2141 = vunpack.c.l.b16 %v2070
      %v2142 = vunpack.c.l.b16 %v2071
      %v2143 = vunpack.c.l.b16 %v2072
      %v2144 = vunpack.c.l.b16 %v2073
      %v2145 = vunpack.c.l.b16 %v2074
      %v2146 = vunpack.c.l.b16 %v2075
      %v2147 = vunpack.c.l.b16 %v2076
      %v2148 = vunpack.c.l.b16 %v2077
      %v2149 = vunpack.c.l.b16 %v2078
      %v2150 = vunpack.c.l.b16 %v2079
      %v2151 = vunpack.c.l.b16 %v2080
      %v2152 = vpack.c.b16 %v2121, %v2120
      %v2153 = vpack.c.b16 %v2123, %v2122
      %v2154 = vpack.c.b16 %v2125, %v2124
      %v2155 = vpack.c.b16 %v2127, %v2126
      %v2156 = vpack.c.b16 %v2129, %v2128
      %v2157 = vpack.c.b16 %v2131, %v2130
      %v2158 = vpack.c.b16 %v2133, %v2132
      %v2159 = vpack.c.b16 %v2135, %v2134
      %v2160 = vpack.c.b16 %v2137, %v2136
      %v2161 = vpack.c.b16 %v2139, %v2138
      %v2162 = vpack.c.b16 %v2141, %v2140
      %v2163 = vpack.c.b16 %v2143, %v2142
      %v2164 = vpack.c.b16 %v2145, %v2144
      %v2165 = vpack.c.b16 %v2147, %v2146
      %v2166 = vpack.c.b16 %v2149, %v2148
      %v2167 = vpack.c.b16 %v2151, %v2150
      %2184 = vmatprep.subr.bf16.mxu0 0
      %2185 = vmatpush1.bf16.msra.mxu0 %v2159
      %2186 = vmatprep.subr.bf16.mxu0 0
      %2187 = vmatpush1.bf16.msra.mxu0 %v2158
      %2188 = vmatprep.subr.bf16.mxu0 0
      %2189 = vmatpush1.bf16.msra.mxu0 %v2157
      %2190 = vmatprep.subr.bf16.mxu0 0
      %2191 = vmatpush1.bf16.msra.mxu0 %v2156
      %2192 = vmatprep.subr.bf16.mxu0 0
      %2193 = vmatpush1.bf16.msra.mxu0 %v2155
      %2194 = vmatprep.subr.bf16.mxu0 0
      %2195 = vmatpush1.bf16.msra.mxu0 %v2154
      %2196 = vmatprep.subr.bf16.mxu0 0
      %2197 = vmatpush1.bf16.msra.mxu0 %v2153
      %2198 = vmatprep.subr.bf16.mxu0 0
      %2199 = vmatpush1.bf16.msra.mxu0 %v2152
      %2200 = vmatprep.subr.bf16.mxu0 0
      %2201 = vmatpush2.bf16.msra.mxu0 %v2167
      %2202 = vmatprep.subr.bf16.mxu0 0
      %2203 = vmatpush2.bf16.msra.mxu0 %v2166
      %2204 = vmatprep.subr.bf16.mxu0 0
      %2205 = vmatpush2.bf16.msra.mxu0 %v2165
      %2206 = vmatprep.subr.bf16.mxu0 0
      %2207 = vmatpush2.bf16.msra.mxu0 %v2164
      %2208 = vmatprep.subr.bf16.mxu0 0
      %2209 = vmatpush2.bf16.msra.mxu0 %v2163
      %2210 = vmatprep.subr.bf16.mxu0 0
      %2211 = vmatpush2.bf16.msra.mxu0 %v2162
      %2212 = vmatprep.subr.bf16.mxu0 0
      %2213 = vmatpush2.bf16.msra.mxu0 %v2161
      %2214 = vmatprep.subr.bf16.mxu0 0
      %2215 = vmatpush2.bf16.msra.mxu0 %v2160
      %2216 = vmatprep.mubr.bf16.mxu0 %v2048
      %2217 = vmatmul.mubr.bf16.gmra.mxu0 %v2047
      %v2218 = vpop.f32.mrf.mxu0
      %v2219 = vadd.f32 %v2086, %v2218
      %v2220 = vpop.f32.mrf.mxu0
      %v2221 = vpop.f32.mrf.mxu0
      %v2222 = vadd.f32 %v2086, %v2221
      %v2223 = vpop.f32.mrf.mxu0
      %2224 = vdwg.mxu0
      %v2225 = vadd.f32 %v1857, %v2219
      %v2226 = vadd.f32 %v1858, %v2222
      %v2227 = vld [vmem:[%s789] sm:$0x1]
      %v2228 = vld [vmem:[%s792] sm:$0x1]
      %2229 = vadd.xlane.f32.xlu0 %v2225
      %v2230 = vpop.xlane.xlu0 %2229
      %2231 = vadd.xlane.f32.xlu0 %v2226
      %v2232 = vpop.xlane.xlu0 %2231
      %v2233 = vmul.f32 %v2230, %v1820
      %v2234 = vmul.f32 %v2232, %v1820
      %v2235 = vmul.f32 %v2225, %v2225
      %v2236 = vmul.f32 %v2226, %v2226
      %2237 = vadd.xlane.f32.xlu0 %v2235
      %v2238 = vpop.xlane.xlu0 %2237
      %2239 = vadd.xlane.f32.xlu0 %v2236
      %v2240 = vpop.xlane.xlu0 %2239
      %v2241 = vmul.f32 %v2238, %v1820
      %v2242 = vmul.f32 %v2240, %v1820
      %v2243 = vmul.f32 %v2233, %v2233
      %v2244 = vmul.f32 %v2234, %v2234
      %v2245 = vsub.f32 %v2241, %v2243
      %v2246 = vsub.f32 %v2242, %v2244
      %v2247 = vsub.f32 %v2225, %v2233
      %v2248 = vsub.f32 %v2226, %v2234
      %v2249 = vadd.f32 %v2245, 1e-12
      %v2250 = vadd.f32 %v2246, 1e-12
      %v2251 = vrsqrt.pop %v2249
      %v2252 = vrsqrt.pop %v2250
      %v2253 = vmul.f32 %v2247, %v2251
      %v2254 = vmul.f32 %v2248, %v2252
      %v2256 = vlaneseq
      %v2257 = vshrl.u32 %v2256, 7
      %v2258 = vsub.s32 0, %v2257
      %v2259 = vrot.slane %v2227, %v2258
      %v2261 = vmul.f32 %v2253, %v2259
      %v2262 = vmul.f32 %v2254, %v2259
      %v2264 = vlaneseq
      %v2265 = vshrl.u32 %v2264, 7
      %v2266 = vsub.s32 0, %v2265
      %v2267 = vrot.slane %v2228, %v2266
      %v2269 = vadd.f32 %v2261, %v2267
      %v2270 = vadd.f32 %v2262, %v2267
      %2271 = vst [vmem:[#allocation2] sm:$0xff] %v2269
      %2272 = vst [vmem:[#allocation2 + $0x8] sm:$0xff] %v2270
      %p2273 = scmp.eq.s32.totalorder %s31, 1
      // Predicated region
      $region105: #{text_classification_forward.1} parent=99 // pred_check
        %p2274 = pneg %p2273
      $region106: #{text_classification_forward.1} parent=99 // pred_check_branch
        %2276 = sbr.rel (%p2274) target = $region108
      $region107: #{text_classification_forward.1} parent=99 // pred_region
        %v2278 = vrot.slane %v2270, 7
        %vm2280 = vcmask 1040384
        %v2281 = vsel %vm2280, %v2269, %v2278
        %v2282 = vpack.c.bf16 %v2281, %v2281
        %v2283 = vld [vmem:[%s16] sm:$0xf]
        %v2284 = vld [vmem:[%s16 + $0x4] sm:$0xf]
        %v2285 = vld [vmem:[%s16 + $0x8] sm:$0xf]
        %v2286 = vld [vmem:[%s16 + $0xc] sm:$0xf]
        %v2287 = vld [vmem:[%s16 + $0x10] sm:$0xf]
        %v2288 = vld [vmem:[%s16 + $0x14] sm:$0xf]
        %v2289 = vld [vmem:[%s16 + $0x18] sm:$0xf]
        %v2290 = vld [vmem:[%s16 + $0x1c] sm:$0xf]
        %v2291 = vld [vmem:[%s16 + $0x20] sm:$0xf]
        %v2292 = vld [vmem:[%s16 + $0x24] sm:$0xf]
        %v2293 = vld [vmem:[%s16 + $0x28] sm:$0xf]
        %v2294 = vld [vmem:[%s16 + $0x2c] sm:$0xf]
        %v2295 = vld [vmem:[%s16 + $0x30] sm:$0xf]
        %v2296 = vld [vmem:[%s16 + $0x34] sm:$0xf]
        %v2297 = vld [vmem:[%s16 + $0x38] sm:$0xf]
        %v2298 = vld [vmem:[%s16 + $0x3c] sm:$0xf]
        %v2299 = vld [vmem:[%s17] sm:$0x1]
        %v2301 = vlaneseq
        %v2302 = vshrl.u32 %v2301, 7
        %v2303 = vsub.s32 0, %v2302
        %v2304 = vrot.slane %v2299, %v2303
        %v2322 = vunpack.c.l.b16 %v2283
        %v2323 = vunpack.c.l.b16 %v2284
        %v2324 = vunpack.c.l.b16 %v2285
        %v2325 = vunpack.c.l.b16 %v2286
        %v2326 = vunpack.c.l.b16 %v2287
        %v2327 = vunpack.c.l.b16 %v2288
        %v2328 = vunpack.c.l.b16 %v2289
        %v2329 = vunpack.c.l.b16 %v2290
        %v2330 = vunpack.c.l.b16 %v2291
        %v2331 = vunpack.c.l.b16 %v2292
        %v2332 = vunpack.c.l.b16 %v2293
        %v2333 = vunpack.c.l.b16 %v2294
        %v2334 = vunpack.c.l.b16 %v2295
        %v2335 = vunpack.c.l.b16 %v2296
        %v2336 = vunpack.c.l.b16 %v2297
        %v2337 = vunpack.c.l.b16 %v2298
        %v2338 = vpack.c.b16 %v2323, %v2322
        %v2339 = vpack.c.b16 %v2325, %v2324
        %v2340 = vpack.c.b16 %v2327, %v2326
        %v2341 = vpack.c.b16 %v2329, %v2328
        %v2342 = vpack.c.b16 %v2331, %v2330
        %v2343 = vpack.c.b16 %v2333, %v2332
        %v2344 = vpack.c.b16 %v2335, %v2334
        %v2345 = vpack.c.b16 %v2337, %v2336
        %2354 = vmatprep.subr.bf16.mxu0 0
        %2355 = vmatpush1.bf16.msra.mxu0 %v2345
        %2356 = vmatprep.subr.bf16.mxu0 0
        %2357 = vmatpush1.bf16.msra.mxu0 %v2344
        %2358 = vmatprep.subr.bf16.mxu0 0
        %2359 = vmatpush1.bf16.msra.mxu0 %v2343
        %2360 = vmatprep.subr.bf16.mxu0 0
        %2361 = vmatpush1.bf16.msra.mxu0 %v2342
        %2362 = vmatprep.subr.bf16.mxu0 0
        %2363 = vmatpush1.bf16.msra.mxu0 %v2341
        %2364 = vmatprep.subr.bf16.mxu0 0
        %2365 = vmatpush1.bf16.msra.mxu0 %v2340
        %2366 = vmatprep.subr.bf16.mxu0 0
        %2367 = vmatpush1.bf16.msra.mxu0 %v2339
        %2368 = vmatprep.subr.bf16.mxu0 0
        %2369 = vmatpush1.bf16.msra.mxu0 %v2338
        %2370 = vmatprep.subr.bf16.mxu0 0
        %2371 = vmatpush2.bf16.msra.mxu0 0
        %2372 = vmatprep.subr.bf16.mxu0 0
        %2373 = vmatpush2.bf16.msra.mxu0 0
        %2374 = vmatprep.subr.bf16.mxu0 0
        %2375 = vmatpush2.bf16.msra.mxu0 0
        %2376 = vmatprep.subr.bf16.mxu0 0
        %2377 = vmatpush2.bf16.msra.mxu0 0
        %2378 = vmatprep.subr.bf16.mxu0 0
        %2379 = vmatpush2.bf16.msra.mxu0 0
        %2380 = vmatprep.subr.bf16.mxu0 0
        %2381 = vmatpush2.bf16.msra.mxu0 0
        %2382 = vmatprep.subr.bf16.mxu0 0
        %2383 = vmatpush2.bf16.msra.mxu0 0
        %2384 = vmatprep.subr.bf16.mxu0 0
        %2385 = vmatpush2.bf16.msra.mxu0 0
        %2386 = vmatprep.mubr.bf16.mxu0 0
        %2387 = vmatmul.mubr.bf16.gmra.mxu0 %v2282
        %v2388 = vpop.f32.mrf.mxu0
        %v2389 = vadd.f32 %v2304, %v2388
        %v2390 = vpop.f32.mrf.mxu0
        %v2391 = vpop.f32.mrf.mxu0
        %v2392 = vpop.f32.mrf.mxu0
        %2393 = vdwg.mxu0
        %v2394 = vtanh.pop %v2389
        %v2395 = vpack.c.bf16 %v2394, %v2394
        %v2396 = vld [vmem:[%s18] sm:$0xf]
        %v2397 = vld [vmem:[%s18 + $0x4] sm:$0xf]
        %v2398 = vld [vmem:[%s18 + $0x8] sm:$0xf]
        %v2399 = vld [vmem:[%s18 + $0xc] sm:$0xf]
        %v2400 = vld [vmem:[%s18 + $0x10] sm:$0xf]
        %v2401 = vld [vmem:[%s18 + $0x14] sm:$0xf]
        %v2402 = vld [vmem:[%s18 + $0x18] sm:$0xf]
        %v2403 = vld [vmem:[%s18 + $0x1c] sm:$0xf]
        %v2404 = vld [vmem:[%s18 + $0x20] sm:$0xf]
        %v2405 = vld [vmem:[%s18 + $0x24] sm:$0xf]
        %v2406 = vld [vmem:[%s18 + $0x28] sm:$0xf]
        %v2407 = vld [vmem:[%s18 + $0x2c] sm:$0xf]
        %v2408 = vld [vmem:[%s18 + $0x30] sm:$0xf]
        %v2409 = vld [vmem:[%s18 + $0x34] sm:$0xf]
        %v2410 = vld [vmem:[%s18 + $0x38] sm:$0xf]
        %v2411 = vld [vmem:[%s18 + $0x3c] sm:$0xf]
        %v2412 = vld [vmem:[%s19] sm:$0x1]
        %v2414 = vlaneseq
        %v2415 = vshrl.u32 %v2414, 7
        %v2416 = vsub.s32 0, %v2415
        %v2417 = vrot.slane %v2412, %v2416
        %v2435 = vunpack.c.l.b16 %v2396
        %v2436 = vunpack.c.l.b16 %v2397
        %v2437 = vunpack.c.l.b16 %v2398
        %v2438 = vunpack.c.l.b16 %v2399
        %v2439 = vunpack.c.l.b16 %v2400
        %v2440 = vunpack.c.l.b16 %v2401
        %v2441 = vunpack.c.l.b16 %v2402
        %v2442 = vunpack.c.l.b16 %v2403
        %v2443 = vunpack.c.l.b16 %v2404
        %v2444 = vunpack.c.l.b16 %v2405
        %v2445 = vunpack.c.l.b16 %v2406
        %v2446 = vunpack.c.l.b16 %v2407
        %v2447 = vunpack.c.l.b16 %v2408
        %v2448 = vunpack.c.l.b16 %v2409
        %v2449 = vunpack.c.l.b16 %v2410
        %v2450 = vunpack.c.l.b16 %v2411
        %v2451 = vpack.c.b16 %v2436, %v2435
        %v2452 = vpack.c.b16 %v2438, %v2437
        %v2453 = vpack.c.b16 %v2440, %v2439
        %v2454 = vpack.c.b16 %v2442, %v2441
        %v2455 = vpack.c.b16 %v2444, %v2443
        %v2456 = vpack.c.b16 %v2446, %v2445
        %v2457 = vpack.c.b16 %v2448, %v2447
        %v2458 = vpack.c.b16 %v2450, %v2449
        %2467 = vmatprep.subr.bf16.mxu0 0
        %2468 = vmatpush1.bf16.msra.mxu0 %v2458
        %2469 = vmatprep.subr.bf16.mxu0 0
        %2470 = vmatpush1.bf16.msra.mxu0 %v2457
        %2471 = vmatprep.subr.bf16.mxu0 0
        %2472 = vmatpush1.bf16.msra.mxu0 %v2456
        %2473 = vmatprep.subr.bf16.mxu0 0
        %2474 = vmatpush1.bf16.msra.mxu0 %v2455
        %2475 = vmatprep.subr.bf16.mxu0 0
        %2476 = vmatpush1.bf16.msra.mxu0 %v2454
        %2477 = vmatprep.subr.bf16.mxu0 0
        %2478 = vmatpush1.bf16.msra.mxu0 %v2453
        %2479 = vmatprep.subr.bf16.mxu0 0
        %2480 = vmatpush1.bf16.msra.mxu0 %v2452
        %2481 = vmatprep.subr.bf16.mxu0 0
        %2482 = vmatpush1.bf16.msra.mxu0 %v2451
        %2483 = vmatprep.subr.bf16.mxu0 0
        %2484 = vmatpush2.bf16.msra.mxu0 0
        %2485 = vmatprep.subr.bf16.mxu0 0
        %2486 = vmatpush2.bf16.msra.mxu0 0
        %2487 = vmatprep.subr.bf16.mxu0 0
        %2488 = vmatpush2.bf16.msra.mxu0 0
        %2489 = vmatprep.subr.bf16.mxu0 0
        %2490 = vmatpush2.bf16.msra.mxu0 0
        %2491 = vmatprep.subr.bf16.mxu0 0
        %2492 = vmatpush2.bf16.msra.mxu0 0
        %2493 = vmatprep.subr.bf16.mxu0 0
        %2494 = vmatpush2.bf16.msra.mxu0 0
        %2495 = vmatprep.subr.bf16.mxu0 0
        %2496 = vmatpush2.bf16.msra.mxu0 0
        %2497 = vmatprep.subr.bf16.mxu0 0
        %2498 = vmatpush2.bf16.msra.mxu0 0
        %2499 = vmatprep.mubr.bf16.mxu0 0
        %2500 = vmatmul.mubr.bf16.gmra.mxu0 %v2395
        %v2501 = vpop.f32.mrf.mxu0
        %v2502 = vadd.f32 %v2417, %v2501
        %v2503 = vpop.f32.mrf.mxu0
        %v2504 = vpop.f32.mrf.mxu0
        %v2505 = vpop.f32.mrf.mxu0
        %2506 = vdwg.mxu0
        %2507 = vst [vmem:[%s20] sm:$0x3] %v2502
      $region108: #{text_classification_forward.1} parent=99 // pred_fallthru
        _
      // Predicated region
      $region109: #{text_classification_forward.1} parent=99 // pred_check
        %p2508 = pneg %p524
      $region110: #{text_classification_forward.1} parent=99 // pred_check_branch
        %2510 = sbr.rel (%p2508) target = $region112
      $region111: #{text_classification_forward.1} parent=99 // pred_region
        _
      $region112: #{text_classification_forward.1} parent=99 // pred_fallthru
        _
      // Predicated region
      $region113: #{text_classification_forward.1} parent=99 // pred_check
        %p2511 = pneg %p524
      $region114: #{text_classification_forward.1} parent=99 // pred_check_branch
        %2513 = sbr.rel (%p2511) target = $region116
      $region115: #{text_classification_forward.1} parent=99 // pred_region
        _
      $region116: #{text_classification_forward.1} parent=99 // pred_fallthru
        _
    $region100: #{text_classification_forward.1} parent=5 // pred_fallthru
      _
    %p2514 = scmp.le.s32.totalorder 2, %s26
    // Predicated region
    $region117: #{text_classification_forward.1} parent=5 // pred_check
      %p2515 = pneg %p2514
    $region118: #{text_classification_forward.1} parent=5 // pred_check_branch
      %2517 = sbr.rel (%p2515) target = $region120
    $region119: #{text_classification_forward.1} parent=5 // pred_region
      %s2518 = ssub.s32 %s26, 2
    $region120: #{text_classification_forward.1} parent=5 // pred_fallthru
      _
  $region6: #{text_classification_forward.1} parent=0 // loop_footer
    %s30 = sadd.s32 1, %s26
  $region7: #{text_classification_forward.1} parent=0 // loop_footer_branch
    %25 = sbr.rel target = $region3
  $region8: #{text_classification_forward.1} parent=0 // loop_exit
    _

</llo_original>
